<compile_context>
chip_gen: v6e
topology: v6e:2x2x1
jax: 0.10.0
libtpu: 0.0.40
codegen_flags: <defaults>
</compile_context>

<pallas_src>
import functools
import math

import jax
import jax.numpy as jnp
from jax import lax
from jax.experimental import pallas as pl
from jax.experimental.pallas import tpu as pltpu

LEAKY_ALPHA = 0.2      # nn.LeakyReLU(alpha=0.2)
NEG_BIG = -1e30        # finite "-inf" so fully-masked rows never produce NaN


def _gat_flash_kernel(hi_ref, hjT_ref, adj_ref, apack_ref, aextra_ref,
                      o_ref, m_ref, l_ref, *, heads, F, relations):
    """One (i, j) node tile of the multi-head GAT layer.

    hi_ref    : [tm, H*F] f32   h rows for the source-node tile i
    hjT_ref   : [H*F, tn] f32   h^T columns for the neighbour tile j (lane-dense)
    adj_ref   : [tm, tn]  int8  adjacency tile (adj[i, j] != 0  <=>  edge i->j)
    apack_ref : [H, F, K] f32   packed [a_src | a_dst | a_diff] columns per head
    aextra_ref: [H, 2, F] f32   [a_abs ; a_prod] rows per head
    o_ref     : [tm, H*F] f32   output block, resident accumulator across j
    m_ref/l_ref:[tm, H]   f32   online-softmax running max / denominator
    """
    j = pl.program_id(1)

    @pl.when(j == 0)
    def _init():
        m_ref[...] = jnp.full(m_ref.shape, NEG_BIG, m_ref.dtype)
        l_ref[...] = jnp.zeros(l_ref.shape, l_ref.dtype)
        o_ref[...] = jnp.zeros(o_ref.shape, o_ref.dtype)

    mask = adj_ref[...].astype(jnp.float32) > 0.0            # [tm, tn]
    hi_all = hi_ref[...]                                      # [tm, H*F]
    hjT_all = hjT_ref[...]                                    # [H*F, tn]

    use_diff = bool(relations.get('difference', False))
    use_abs = bool(relations.get('abs_difference', False))
    use_prod = bool(relations.get('elem_product', False))

    for h in range(heads):                                    # heads is small: static unroll
        fsl = slice(h * F, (h + 1) * F)
        hi = hi_all[:, fsl]                                   # [tm, F]
        hjT = hjT_all[fsl, :]                                 # [F, tn]
        a_pack = apack_ref[h]                                 # [F, K]

        # Packed per-node reductions (replaces M=1 matvecs / separate sums):
        #   si[:, 0] = a_src.h_i,  si[:, 2] = a_diff.h_i     (column vectors)
        #   sj[1, :] = a_dst.h_j,  sj[2, :] = a_diff.h_j     (lane-dense rows)
        si = jnp.dot(hi, a_pack, preferred_element_type=jnp.float32)           # [tm, K]
        sj = lax.dot_general(a_pack, hjT, (((0,), (0,)), ((), ())),
                             preferred_element_type=jnp.float32)               # [K, tn]

        e = si[:, 0:1] + sj[1:2, :]                           # [tm, tn]
        if use_diff:
            e = e + (sj[2:3, :] - si[:, 2:3])                 # a_diff . (h_j - h_i)

        ae = aextra_ref[h]                                    # [2, F]
        if use_abs:
            # O(F * tm * tn) VPU loop; operands stay tile-resident in vregs.
            a_abs = ae[0:1, :]                                # [1, F]
            for f in range(F):
                d = hjT[f:f + 1, :] - hi[:, f:f + 1]          # [tm, tn]
                e = e + a_abs[:, f:f + 1] * jnp.abs(d)
        if use_prod:
            # sum_f a_prod[f] h_i[f] h_j[f]  ==  (h_i * a_prod) @ h_j^T  (f32, see header)
            a_prod = ae[1:2, :]                               # [1, F]
            e = e + jnp.dot(hi * a_prod, hjT, preferred_element_type=jnp.float32)

        e = jnp.where(e > 0, e, LEAKY_ALPHA * e)              # LeakyReLU
        e = jnp.where(mask, e, NEG_BIG)                       # mask BEFORE exp (no inf)

        # Online (flash-style) masked softmax over the neighbour axis.
        m_old = m_ref[:, h:h + 1]                             # [tm, 1]
        m_new = jnp.maximum(m_old, jnp.max(e, axis=1, keepdims=True))
        alpha = jnp.exp(m_old - m_new)                        # rescale factor
        p = jnp.where(mask, jnp.exp(e - m_new), 0.0)          # [tm, tn]
        l_ref[:, h:h + 1] = alpha * l_ref[:, h:h + 1] + jnp.sum(p, axis=1, keepdims=True)
        m_ref[:, h:h + 1] = m_new

        # out_i += sum_j p_ij h_j  -- bf16 MXU inputs, f32 accumulation.
        pv = lax.dot_general(p.astype(jnp.bfloat16), hjT.astype(jnp.bfloat16),
                             (((1,), (1,)), ((), ())),
                             preferred_element_type=jnp.float32)                # [tm, F]
        o_ref[:, fsl] = alpha * o_ref[:, fsl] + pv

    @pl.when(j == pl.num_programs(1) - 1)
    def _finalize():
        # torch sparse softmax denominator: sum + 1e-16; divide on the EUP.
        inv = pl.reciprocal(l_ref[...] + jnp.float32(1e-16), approx=True)       # [tm, H]
        for h in range(heads):
            fsl = slice(h * F, (h + 1) * F)
            o_ref[:, fsl] = o_ref[:, fsl] * inv[:, h:h + 1]
    # TODO(synk): attention dropout (nn.Dropout on alpha) omitted — eval-mode identity.


def _pick_tile(n, pref, quantum):
    """Largest tile <= pref that divides n and is a multiple of `quantum`,
    falling back to the full dimension (always legal for a BlockSpec)."""
    if n <= pref:
        return n
    cand = None
    t = quantum
    while t <= pref:
        if n % t == 0:
            cand = t
        t += quantum
    return cand if cand is not None else n


def graph_att_conv(x, adj_mask, weights, attn, relations,
                   tm=256, tn=512, vmem_limit_bytes=64 * 1024 * 1024):
    """Multi-head GAT forward (== torch.cat over heads along dim=1).

    x        : [N, Fin] f32
    adj_mask : [N, N]   any dtype; adj_mask[i, j] != 0 iff edge (i -> j)
    weights  : [H, Fin, F] per-head projection
    attn     : [H, 1, C]   per-head attention vector (C = 2F + F per relation)
    Returns  : [N, H*F] f32
    """
    H, Fin, F = weights.shape
    HF = H * F
    N = x.shape[0]

    # h for ALL heads in one lane-dense matmul, plus a transposed copy for
    # lane-dense neighbour-side access inside the kernel.
    w_all = jnp.transpose(weights, (1, 0, 2)).reshape(Fin, HF)          # [Fin, H*F]
    h_all = jnp.dot(x.astype(jnp.float32), w_all,
                    preferred_element_type=jnp.float32)                 # [N, H*F]
    h_t = h_all.T                                                       # [H*F, N]

    # Pack the attention vector: columns [a_src | a_dst | a_diff?], extras rows.
    a = attn[:, 0, :].astype(jnp.float32)                               # [H, C]
    off = 0
    a_src = a[:, off:off + F]; off += F
    a_dst = a[:, off:off + F]; off += F
    cols = [a_src, a_dst]
    if relations.get('difference', False):
        cols.append(a[:, off:off + F]); off += F
    if relations.get('abs_difference', False):
        a_abs = a[:, off:off + F]; off += F
    else:
        a_abs = jnp.zeros((H, F), jnp.float32)
    if relations.get('elem_product', False):
        a_prod = a[:, off:off + F]; off += F
    else:
        a_prod = jnp.zeros((H, F), jnp.float32)
    a_pack = jnp.stack(cols, axis=-1)                                   # [H, F, K]
    a_extra = jnp.stack([a_abs, a_prod], axis=1)                        # [H, 2, F]
    K = a_pack.shape[-1]

    adj_i8 = (adj_mask != 0).astype(jnp.int8)                           # 4x less DMA than f32

    tm = _pick_tile(N, tm, 32)      # sublane quantum (int8-safe)
    tn = _pick_tile(N, tn, 128)     # lane quantum

    kernel = functools.partial(_gat_flash_kernel, heads=H, F=F, relations=relations)

    out = pl.pallas_call(
        kernel,
        out_shape=jax.ShapeDtypeStruct((N, HF), jnp.float32),
        grid=(N // tm, N // tn),
        in_specs=[
            pl.BlockSpec((tm, HF), lambda i, j: (i, 0)),        # h rows (source tile)
            pl.BlockSpec((HF, tn), lambda i, j: (0, j)),        # h^T cols (neighbour tile)
            pl.BlockSpec((tm, tn), lambda i, j: (i, j)),        # adjacency tile (int8)
            pl.BlockSpec((H, F, K), lambda i, j: (0, 0, 0)),    # packed attention columns
            pl.BlockSpec((H, 2, F), lambda i, j: (0, 0, 0)),    # a_abs / a_prod rows
        ],
        out_specs=pl.BlockSpec((tm, HF), lambda i, j: (i, 0)),  # lane-dense, resident over j
        scratch_shapes=[pltpu.VMEM((tm, H), jnp.float32),       # running max
                        pltpu.VMEM((tm, H), jnp.float32)],      # running denominator
        compiler_params=pltpu.CompilerParams(
            dimension_semantics=("parallel", "arbitrary"),
            vmem_limit_bytes=vmem_limit_bytes),
    )(h_all, h_t, adj_i8, a_pack, a_extra)
    return out


def graph_att_conv_ref(x, adj_mask, weights, attn, relations):
    """Dense pure-JAX reference with the PyTorch forward semantics."""
    H, Fin, F = weights.shape
    mask = adj_mask != 0
    outs = []
    for h in range(H):
        hw = x @ weights[h]                                   # [N, F]
        a = attn[h, 0]                                        # [C]
        off = 0
        a_src = a[off:off + F]; off += F
        a_dst = a[off:off + F]; off += F
        e = hw @ a_src[:, None] + (hw @ a_dst[:, None]).T     # [N, N]
        if relations.get('difference', False):
            a_d = a[off:off + F]; off += F
            e = e + (hw @ a_d[:, None]).T - hw @ a_d[:, None]
        if relations.get('abs_difference', False):
            a_ab = a[off:off + F]; off += F
            e = e + jnp.einsum('ijf,f->ij',
                               jnp.abs(hw[None, :, :] - hw[:, None, :]), a_ab)
        if relations.get('elem_product', False):
            a_p = a[off:off + F]; off += F
            e = e + (hw * a_p) @ hw.T
        e = jnp.where(e > 0, e, LEAKY_ALPHA * e)
        e = jnp.where(mask, e, -jnp.inf)
        emax = jnp.max(e, axis=1, keepdims=True)
        emax = jnp.where(jnp.isfinite(emax), emax, 0.0)
        p = jnp.where(mask, jnp.exp(e - emax), 0.0)
        p = p / (jnp.sum(p, axis=1, keepdims=True) + 1e-16)
        outs.append(p @ hw)
    return jnp.concatenate(outs, axis=1)


if __name__ == "__main__":
    # Small, deterministic configuration.
    N, in_features, out_features, heads = 16, 32, 8, 2
    relations = {'difference': True, 'abs_difference': True, 'elem_product': True}
    F = out_features // heads
    C = 2 * F + sum(F for v in relations.values() if v)

    key = jax.random.PRNGKey(0)
    k_x, k_w, k_a = jax.random.split(key, 3)

    # xavier_normal_ with gain = calculate_gain('relu') = sqrt(2)
    gain = math.sqrt(2.0)
    std_w = gain * math.sqrt(2.0 / (in_features + F))
    std_a = gain * math.sqrt(2.0 / (1 + C))

    x = jax.random.normal(k_x, (N, in_features), dtype=jnp.float32)
    weights = jax.random.normal(k_w, (heads, in_features, F), dtype=jnp.float32) * std_w
    attn = jax.random.normal(k_a, (heads, 1, C), dtype=jnp.float32) * std_a

    # Deterministic sparse adjacency as a dense mask (self loop + 3 neighbours).
    adj = jnp.zeros((N, N), dtype=jnp.float32)
    rows = jnp.arange(N)
    for off in (0, 1, 3, 7):
        adj = adj.at[rows, (rows + off) % N].set(1.0)

    out = graph_att_conv(x, adj, weights, attn, relations)
    jax.block_until_ready(out)
    assert out.shape == (N, heads * F)
    assert bool(jnp.all(jnp.isfinite(out)))

    ref = graph_att_conv_ref(x, adj, weights, attn, relations)
    err = float(jnp.max(jnp.abs(out - ref)))
    assert err < 1e-1, f"kernel/reference mismatch: max abs err = {err}"
    print("KERNEL_OK")
</pallas_src>

<mosaic_0001>
module attributes {stable_mosaic.version = 11 : i64} {
  func.func @_gat_flash_kernel(%arg0: i32, %arg1: i32, %arg2: memref<16x8xf32, #tpu.memory_space<vmem>>, %arg3: memref<8x16xf32, #tpu.memory_space<vmem>>, %arg4: memref<16x16xi8, #tpu.memory_space<vmem>>, %arg5: memref<2x4x3xf32, #tpu.memory_space<vmem>>, %arg6: memref<2x2x4xf32, #tpu.memory_space<vmem>>, %arg7: memref<16x8xf32, #tpu.memory_space<vmem>>, %arg8: memref<16x2xf32, #tpu.memory_space<vmem>>, %arg9: memref<16x2xf32, #tpu.memory_space<vmem>>) attributes {dimension_semantics = [#tpu.dimension_semantics<parallel>, #tpu.dimension_semantics<arbitrary>], iteration_bounds = array<i64: 1, 1>, scalar_prefetch = 0 : i64, scratch_operands = 2 : i64, tpu.core_type = #tpu.core_type<tc>, window_params = [{transform_indices = @transform_0, window_bounds = array<i64: 16, 8>}, {transform_indices = @transform_1, window_bounds = array<i64: 8, 16>}, {transform_indices = @transform_2, window_bounds = array<i64: 16, 16>}, {pipeline_mode = #tpu.pipeline_mode<synchronous>, transform_indices = @transform_3, window_bounds = array<i64: 2, 4, 3>}, {pipeline_mode = #tpu.pipeline_mode<synchronous>, transform_indices = @transform_4, window_bounds = array<i64: 2, 2, 4>}, {transform_indices = @transform_5, window_bounds = array<i64: 16, 8>}]} {
    %c0_i32 = arith.constant 0 : i32
    %0 = arith.cmpi eq, %arg1, %c0_i32 : i32
    %1 = arith.extui %0 : i1 to i32
    %c0_i32_0 = arith.constant 0 : i32
    %2 = arith.cmpi ne, %1, %c0_i32_0 : i32
    scf.if %2 {
      %cst_62 = arith.constant -1.000000e+30 : f32
      %208 = vector.broadcast %cst_62 : f32 to vector<16x2xf32>
      %c0_63 = arith.constant 0 : index
      %c0_64 = arith.constant 0 : index
      %209 = vector.load %arg8[%c0_63, %c0_64] : memref<16x2xf32, #tpu.memory_space<vmem>>, vector<16x2xf32>
      tpu.vector_store %arg8[%c0_63, %c0_64], %208 {strides = array<i32>} : memref<16x2xf32, #tpu.memory_space<vmem>>, vector<16x2xf32>,
      %cst_65 = arith.constant 0.000000e+00 : f32
      %210 = vector.broadcast %cst_65 : f32 to vector<16x2xf32>
      %c0_66 = arith.constant 0 : index
      %c0_67 = arith.constant 0 : index
      %211 = vector.load %arg9[%c0_66, %c0_67] : memref<16x2xf32, #tpu.memory_space<vmem>>, vector<16x2xf32>
      tpu.vector_store %arg9[%c0_66, %c0_67], %210 {strides = array<i32>} : memref<16x2xf32, #tpu.memory_space<vmem>>, vector<16x2xf32>,
      %cst_68 = arith.constant 0.000000e+00 : f32
      %212 = vector.broadcast %cst_68 : f32 to vector<16x8xf32>
      %c0_69 = arith.constant 0 : index
      %c0_70 = arith.constant 0 : index
      %213 = vector.load %arg7[%c0_69, %c0_70] : memref<16x8xf32, #tpu.memory_space<vmem>>, vector<16x8xf32>
      tpu.vector_store %arg7[%c0_69, %c0_70], %212 {strides = array<i32>} : memref<16x8xf32, #tpu.memory_space<vmem>>, vector<16x8xf32>,
    } else {
    }
    %c0 = arith.constant 0 : index
    %c0_1 = arith.constant 0 : index
    %3 = vector.load %arg4[%c0, %c0_1] : memref<16x16xi8, #tpu.memory_space<vmem>>, vector<16x16xi8>
    %4 = arith.sitofp %3 : vector<16x16xi8> to vector<16x16xf32>
    %cst = arith.constant 0.000000e+00 : f32
    %5 = vector.broadcast %cst : f32 to vector<16x16xf32>
    %6 = arith.cmpf ogt, %4, %5 : vector<16x16xf32>
    %c0_2 = arith.constant 0 : index
    %c0_3 = arith.constant 0 : index
    %7 = vector.load %arg2[%c0_2, %c0_3] : memref<16x8xf32, #tpu.memory_space<vmem>>, vector<16x8xf32>
    %c0_4 = arith.constant 0 : index
    %c0_5 = arith.constant 0 : index
    %8 = vector.load %arg3[%c0_4, %c0_5] : memref<8x16xf32, #tpu.memory_space<vmem>>, vector<8x16xf32>
    %9 = vector.extract_strided_slice %7 {offsets = [0, 0], sizes = [16, 4], strides = [1, 1]} : vector<16x8xf32> to vector<16x4xf32>
    %10 = vector.extract_strided_slice %8 {offsets = [0, 0], sizes = [4, 16], strides = [1, 1]} : vector<8x16xf32> to vector<4x16xf32>
    %c0_6 = arith.constant 0 : index
    %c0_7 = arith.constant 0 : index
    %c0_8 = arith.constant 0 : index
    %11 = vector.load %arg5[%c0_6, %c0_7, %c0_8] : memref<2x4x3xf32, #tpu.memory_space<vmem>>, vector<1x4x3xf32>
    %12 = vector.shape_cast %11 : vector<1x4x3xf32> to vector<4x3xf32>
    %cst_9 = arith.constant dense<0.000000e+00> : vector<16x3xf32>
    %13 = tpu.matmul %9, %12, %cst_9 {dimension_numbers = #tpu.dot_dimension_numbers<[1], [0], [0], [1], [0, 0, 1, 1], [], []>} : vector<16x4xf32>, vector<4x3xf32>, vector<16x3xf32> -> vector<16x3xf32>
    %cst_10 = arith.constant dense<0.000000e+00> : vector<3x16xf32>
    %14 = tpu.matmul %12, %10, %cst_10 {dimension_numbers = #tpu.dot_dimension_numbers<[0], [0], [1], [1], [0, 1, 1, 1], [], []>} : vector<4x3xf32>, vector<4x16xf32>, vector<3x16xf32> -> vector<3x16xf32>
    %15 = vector.extract_strided_slice %13 {offsets = [0, 0], sizes = [16, 1], strides = [1, 1]} : vector<16x3xf32> to vector<16x1xf32>
    %16 = vector.extract_strided_slice %14 {offsets = [1, 0], sizes = [1, 16], strides = [1, 1]} : vector<3x16xf32> to vector<1x16xf32>
    %17 = vector.broadcast %15 : vector<16x1xf32> to vector<16x16xf32>
    %18 = vector.broadcast %16 : vector<1x16xf32> to vector<16x16xf32>
    %19 = arith.addf %17, %18 : vector<16x16xf32>
    %20 = vector.extract_strided_slice %14 {offsets = [2, 0], sizes = [1, 16], strides = [1, 1]} : vector<3x16xf32> to vector<1x16xf32>
    %21 = vector.extract_strided_slice %13 {offsets = [0, 2], sizes = [16, 1], strides = [1, 1]} : vector<16x3xf32> to vector<16x1xf32>
    %22 = vector.broadcast %20 : vector<1x16xf32> to vector<16x16xf32>
    %23 = vector.broadcast %21 : vector<16x1xf32> to vector<16x16xf32>
    %24 = arith.subf %22, %23 : vector<16x16xf32>
    %25 = arith.addf %19, %24 : vector<16x16xf32>
    %c0_11 = arith.constant 0 : index
    %c0_12 = arith.constant 0 : index
    %c0_13 = arith.constant 0 : index
    %26 = vector.load %arg6[%c0_11, %c0_12, %c0_13] : memref<2x2x4xf32, #tpu.memory_space<vmem>>, vector<1x2x4xf32>
    %27 = vector.shape_cast %26 : vector<1x2x4xf32> to vector<2x4xf32>
    %28 = vector.extract_strided_slice %27 {offsets = [0, 0], sizes = [1, 4], strides = [1, 1]} : vector<2x4xf32> to vector<1x4xf32>
    %29 = vector.extract_strided_slice %10 {offsets = [0, 0], sizes = [1, 16], strides = [1, 1]} : vector<4x16xf32> to vector<1x16xf32>
    %30 = vector.extract_strided_slice %9 {offsets = [0, 0], sizes = [16, 1], strides = [1, 1]} : vector<16x4xf32> to vector<16x1xf32>
    %31 = vector.broadcast %29 : vector<1x16xf32> to vector<16x16xf32>
    %32 = vector.broadcast %30 : vector<16x1xf32> to vector<16x16xf32>
    %33 = arith.subf %31, %32 : vector<16x16xf32>
    %34 = vector.extract_strided_slice %28 {offsets = [0, 0], sizes = [1, 1], strides = [1, 1]} : vector<1x4xf32> to vector<1x1xf32>
    %35 = math.absf %33 : vector<16x16xf32>
    %36 = vector.broadcast %34 : vector<1x1xf32> to vector<16x16xf32>
    %37 = arith.mulf %36, %35 : vector<16x16xf32>
    %38 = arith.addf %25, %37 : vector<16x16xf32>
    %39 = vector.extract_strided_slice %10 {offsets = [1, 0], sizes = [1, 16], strides = [1, 1]} : vector<4x16xf32> to vector<1x16xf32>
    %40 = vector.extract_strided_slice %9 {offsets = [0, 1], sizes = [16, 1], strides = [1, 1]} : vector<16x4xf32> to vector<16x1xf32>
    %41 = vector.broadcast %39 : vector<1x16xf32> to vector<16x16xf32>
    %42 = vector.broadcast %40 : vector<16x1xf32> to vector<16x16xf32>
    %43 = arith.subf %41, %42 : vector<16x16xf32>
    %44 = vector.extract_strided_slice %28 {offsets = [0, 1], sizes = [1, 1], strides = [1, 1]} : vector<1x4xf32> to vector<1x1xf32>
    %45 = math.absf %43 : vector<16x16xf32>
    %46 = vector.broadcast %44 : vector<1x1xf32> to vector<16x16xf32>
    %47 = arith.mulf %46, %45 : vector<16x16xf32>
    %48 = arith.addf %38, %47 : vector<16x16xf32>
    %49 = vector.extract_strided_slice %10 {offsets = [2, 0], sizes = [1, 16], strides = [1, 1]} : vector<4x16xf32> to vector<1x16xf32>
    %50 = vector.extract_strided_slice %9 {offsets = [0, 2], sizes = [16, 1], strides = [1, 1]} : vector<16x4xf32> to vector<16x1xf32>
    %51 = vector.broadcast %49 : vector<1x16xf32> to vector<16x16xf32>
    %52 = vector.broadcast %50 : vector<16x1xf32> to vector<16x16xf32>
    %53 = arith.subf %51, %52 : vector<16x16xf32>
    %54 = vector.extract_strided_slice %28 {offsets = [0, 2], sizes = [1, 1], strides = [1, 1]} : vector<1x4xf32> to vector<1x1xf32>
    %55 = math.absf %53 : vector<16x16xf32>
    %56 = vector.broadcast %54 : vector<1x1xf32> to vector<16x16xf32>
    %57 = arith.mulf %56, %55 : vector<16x16xf32>
    %58 = arith.addf %48, %57 : vector<16x16xf32>
    %59 = vector.extract_strided_slice %10 {offsets = [3, 0], sizes = [1, 16], strides = [1, 1]} : vector<4x16xf32> to vector<1x16xf32>
    %60 = vector.extract_strided_slice %9 {offsets = [0, 3], sizes = [16, 1], strides = [1, 1]} : vector<16x4xf32> to vector<16x1xf32>
    %61 = vector.broadcast %59 : vector<1x16xf32> to vector<16x16xf32>
    %62 = vector.broadcast %60 : vector<16x1xf32> to vector<16x16xf32>
    %63 = arith.subf %61, %62 : vector<16x16xf32>
    %64 = vector.extract_strided_slice %28 {offsets = [0, 3], sizes = [1, 1], strides = [1, 1]} : vector<1x4xf32> to vector<1x1xf32>
    %65 = math.absf %63 : vector<16x16xf32>
    %66 = vector.broadcast %64 : vector<1x1xf32> to vector<16x16xf32>
    %67 = arith.mulf %66, %65 : vector<16x16xf32>
    %68 = arith.addf %58, %67 : vector<16x16xf32>
    %69 = vector.extract_strided_slice %27 {offsets = [1, 0], sizes = [1, 4], strides = [1, 1]} : vector<2x4xf32> to vector<1x4xf32>
    %70 = vector.broadcast %69 : vector<1x4xf32> to vector<16x4xf32>
    %71 = arith.mulf %9, %70 : vector<16x4xf32>
    %cst_14 = arith.constant dense<0.000000e+00> : vector<16x16xf32>
    %72 = tpu.matmul %71, %10, %cst_14 {dimension_numbers = #tpu.dot_dimension_numbers<[1], [0], [0], [1], [0, 0, 1, 1], [], []>} : vector<16x4xf32>, vector<4x16xf32>, vector<16x16xf32> -> vector<16x16xf32>
    %73 = arith.addf %68, %72 : vector<16x16xf32>
    %cst_15 = arith.constant 0.000000e+00 : f32
    %74 = vector.broadcast %cst_15 : f32 to vector<16x16xf32>
    %75 = arith.cmpf ogt, %73, %74 : vector<16x16xf32>
    %cst_16 = arith.constant 2.000000e-01 : f32
    %76 = vector.broadcast %cst_16 : f32 to vector<16x16xf32>
    %77 = arith.mulf %76, %73 : vector<16x16xf32>
    %78 = arith.select %75, %73, %77 : vector<16x16xi1>, vector<16x16xf32>
    %cst_17 = arith.constant -1.000000e+30 : f32
    %79 = vector.broadcast %cst_17 : f32 to vector<16x16xf32>
    %80 = arith.select %6, %78, %79 : vector<16x16xi1>, vector<16x16xf32>
    %c0_18 = arith.constant 0 : index
    %c0_19 = arith.constant 0 : index
    %81 = vector.load %arg8[%c0_18, %c0_19] : memref<16x2xf32, #tpu.memory_space<vmem>>, vector<16x1xf32>
    %cst_20 = arith.constant dense<0xFF800000> : vector<16xf32>
    %82 = vector.multi_reduction <maximumf>, %80, %cst_20 [1] : vector<16x16xf32> to vector<16xf32>
    %83 = vector.shape_cast %82 : vector<16xf32> to vector<16x1xf32>
    %84 = arith.maximumf %81, %83 : vector<16x1xf32>
    %85 = arith.subf %81, %84 : vector<16x1xf32>
    %86 = math.exp %85 : vector<16x1xf32>
    %87 = vector.broadcast %84 : vector<16x1xf32> to vector<16x16xf32>
    %88 = arith.subf %80, %87 : vector<16x16xf32>
    %89 = math.exp %88 : vector<16x16xf32>
    %cst_21 = arith.constant 0.000000e+00 : f32
    %90 = vector.broadcast %cst_21 : f32 to vector<16x16xf32>
    %91 = arith.select %6, %89, %90 : vector<16x16xi1>, vector<16x16xf32>
    %c0_22 = arith.constant 0 : index
    %c0_23 = arith.constant 0 : index
    %92 = vector.load %arg9[%c0_22, %c0_23] : memref<16x2xf32, #tpu.memory_space<vmem>>, vector<16x1xf32>
    %93 = arith.mulf %86, %92 : vector<16x1xf32>
    %cst_24 = arith.constant dense<0.000000e+00> : vector<16xf32>
    %94 = vector.multi_reduction <add>, %91, %cst_24 [1] : vector<16x16xf32> to vector<16xf32>
    %95 = vector.shape_cast %94 : vector<16xf32> to vector<16x1xf32>
    %96 = arith.addf %93, %95 : vector<16x1xf32>
    %c0_25 = arith.constant 0 : index
    %c0_26 = arith.constant 0 : index
    %97 = vector.load %arg9[%c0_25, %c0_26] : memref<16x2xf32, #tpu.memory_space<vmem>>, vector<16x1xf32>
    tpu.vector_store %arg9[%c0_25, %c0_26], %96 {strides = array<i32>} : memref<16x2xf32, #tpu.memory_space<vmem>>, vector<16x1xf32>,
    %c0_27 = arith.constant 0 : index
    %c0_28 = arith.constant 0 : index
    %98 = vector.load %arg8[%c0_27, %c0_28] : memref<16x2xf32, #tpu.memory_space<vmem>>, vector<16x1xf32>
    tpu.vector_store %arg8[%c0_27, %c0_28], %84 {strides = array<i32>} : memref<16x2xf32, #tpu.memory_space<vmem>>, vector<16x1xf32>,
    %99 = arith.truncf %91 : vector<16x16xf32> to vector<16x16xbf16>
    %100 = arith.truncf %10 : vector<4x16xf32> to vector<4x16xbf16>
    %cst_29 = arith.constant dense<0.000000e+00> : vector<16x4xf32>
    %101 = tpu.matmul %99, %100, %cst_29 {dimension_numbers = #tpu.dot_dimension_numbers<[1], [1], [0], [0], [0, 0, 1, 0], [], []>} : vector<16x16xbf16>, vector<4x16xbf16>, vector<16x4xf32> -> vector<16x4xf32>
    %c0_30 = arith.constant 0 : index
    %c0_31 = arith.constant 0 : index
    %102 = vector.load %arg7[%c0_30, %c0_31] : memref<16x8xf32, #tpu.memory_space<vmem>>, vector<16x4xf32>
    %103 = vector.broadcast %86 : vector<16x1xf32> to vector<16x4xf32>
    %104 = arith.mulf %103, %102 : vector<16x4xf32>
    %105 = arith.addf %104, %101 : vector<16x4xf32>
    %c0_32 = arith.constant 0 : index
    %c0_33 = arith.constant 0 : index
    %106 = vector.load %arg7[%c0_32, %c0_33] : memref<16x8xf32, #tpu.memory_space<vmem>>, vector<16x4xf32>
    tpu.vector_store %arg7[%c0_32, %c0_33], %105 {strides = array<i32>} : memref<16x8xf32, #tpu.memory_space<vmem>>, vector<16x4xf32>,
    %107 = vector.extract_strided_slice %7 {offsets = [0, 4], sizes = [16, 4], strides = [1, 1]} : vector<16x8xf32> to vector<16x4xf32>
    %108 = vector.extract_strided_slice %8 {offsets = [4, 0], sizes = [4, 16], strides = [1, 1]} : vector<8x16xf32> to vector<4x16xf32>
    %c1 = arith.constant 1 : index
    %c0_34 = arith.constant 0 : index
    %c0_35 = arith.constant 0 : index
    %109 = vector.load %arg5[%c1, %c0_34, %c0_35] : memref<2x4x3xf32, #tpu.memory_space<vmem>>, vector<1x4x3xf32>
    %110 = vector.shape_cast %109 : vector<1x4x3xf32> to vector<4x3xf32>
    %cst_36 = arith.constant dense<0.000000e+00> : vector<16x3xf32>
    %111 = tpu.matmul %107, %110, %cst_36 {dimension_numbers = #tpu.dot_dimension_numbers<[1], [0], [0], [1], [0, 0, 1, 1], [], []>} : vector<16x4xf32>, vector<4x3xf32>, vector<16x3xf32> -> vector<16x3xf32>
    %cst_37 = arith.constant dense<0.000000e+00> : vector<3x16xf32>
    %112 = tpu.matmul %110, %108, %cst_37 {dimension_numbers = #tpu.dot_dimension_numbers<[0], [0], [1], [1], [0, 1, 1, 1], [], []>} : vector<4x3xf32>, vector<4x16xf32>, vector<3x16xf32> -> vector<3x16xf32>
    %113 = vector.extract_strided_slice %111 {offsets = [0, 0], sizes = [16, 1], strides = [1, 1]} : vector<16x3xf32> to vector<16x1xf32>
    %114 = vector.extract_strided_slice %112 {offsets = [1, 0], sizes = [1, 16], strides = [1, 1]} : vector<3x16xf32> to vector<1x16xf32>
    %115 = vector.broadcast %113 : vector<16x1xf32> to vector<16x16xf32>
    %116 = vector.broadcast %114 : vector<1x16xf32> to vector<16x16xf32>
    %117 = arith.addf %115, %116 : vector<16x16xf32>
    %118 = vector.extract_strided_slice %112 {offsets = [2, 0], sizes = [1, 16], strides = [1, 1]} : vector<3x16xf32> to vector<1x16xf32>
    %119 = vector.extract_strided_slice %111 {offsets = [0, 2], sizes = [16, 1], strides = [1, 1]} : vector<16x3xf32> to vector<16x1xf32>
    %120 = vector.broadcast %118 : vector<1x16xf32> to vector<16x16xf32>
    %121 = vector.broadcast %119 : vector<16x1xf32> to vector<16x16xf32>
    %122 = arith.subf %120, %121 : vector<16x16xf32>
    %123 = arith.addf %117, %122 : vector<16x16xf32>
    %c1_38 = arith.constant 1 : index
    %c0_39 = arith.constant 0 : index
    %c0_40 = arith.constant 0 : index
    %124 = vector.load %arg6[%c1_38, %c0_39, %c0_40] : memref<2x2x4xf32, #tpu.memory_space<vmem>>, vector<1x2x4xf32>
    %125 = vector.shape_cast %124 : vector<1x2x4xf32> to vector<2x4xf32>
    %126 = vector.extract_strided_slice %125 {offsets = [0, 0], sizes = [1, 4], strides = [1, 1]} : vector<2x4xf32> to vector<1x4xf32>
    %127 = vector.extract_strided_slice %108 {offsets = [0, 0], sizes = [1, 16], strides = [1, 1]} : vector<4x16xf32> to vector<1x16xf32>
    %128 = vector.extract_strided_slice %107 {offsets = [0, 0], sizes = [16, 1], strides = [1, 1]} : vector<16x4xf32> to vector<16x1xf32>
    %129 = vector.broadcast %127 : vector<1x16xf32> to vector<16x16xf32>
    %130 = vector.broadcast %128 : vector<16x1xf32> to vector<16x16xf32>
    %131 = arith.subf %129, %130 : vector<16x16xf32>
    %132 = vector.extract_strided_slice %126 {offsets = [0, 0], sizes = [1, 1], strides = [1, 1]} : vector<1x4xf32> to vector<1x1xf32>
    %133 = math.absf %131 : vector<16x16xf32>
    %134 = vector.broadcast %132 : vector<1x1xf32> to vector<16x16xf32>
    %135 = arith.mulf %134, %133 : vector<16x16xf32>
    %136 = arith.addf %123, %135 : vector<16x16xf32>
    %137 = vector.extract_strided_slice %108 {offsets = [1, 0], sizes = [1, 16], strides = [1, 1]} : vector<4x16xf32> to vector<1x16xf32>
    %138 = vector.extract_strided_slice %107 {offsets = [0, 1], sizes = [16, 1], strides = [1, 1]} : vector<16x4xf32> to vector<16x1xf32>
    %139 = vector.broadcast %137 : vector<1x16xf32> to vector<16x16xf32>
    %140 = vector.broadcast %138 : vector<16x1xf32> to vector<16x16xf32>
    %141 = arith.subf %139, %140 : vector<16x16xf32>
    %142 = vector.extract_strided_slice %126 {offsets = [0, 1], sizes = [1, 1], strides = [1, 1]} : vector<1x4xf32> to vector<1x1xf32>
    %143 = math.absf %141 : vector<16x16xf32>
    %144 = vector.broadcast %142 : vector<1x1xf32> to vector<16x16xf32>
    %145 = arith.mulf %144, %143 : vector<16x16xf32>
    %146 = arith.addf %136, %145 : vector<16x16xf32>
    %147 = vector.extract_strided_slice %108 {offsets = [2, 0], sizes = [1, 16], strides = [1, 1]} : vector<4x16xf32> to vector<1x16xf32>
    %148 = vector.extract_strided_slice %107 {offsets = [0, 2], sizes = [16, 1], strides = [1, 1]} : vector<16x4xf32> to vector<16x1xf32>
    %149 = vector.broadcast %147 : vector<1x16xf32> to vector<16x16xf32>
    %150 = vector.broadcast %148 : vector<16x1xf32> to vector<16x16xf32>
    %151 = arith.subf %149, %150 : vector<16x16xf32>
    %152 = vector.extract_strided_slice %126 {offsets = [0, 2], sizes = [1, 1], strides = [1, 1]} : vector<1x4xf32> to vector<1x1xf32>
    %153 = math.absf %151 : vector<16x16xf32>
    %154 = vector.broadcast %152 : vector<1x1xf32> to vector<16x16xf32>
    %155 = arith.mulf %154, %153 : vector<16x16xf32>
    %156 = arith.addf %146, %155 : vector<16x16xf32>
    %157 = vector.extract_strided_slice %108 {offsets = [3, 0], sizes = [1, 16], strides = [1, 1]} : vector<4x16xf32> to vector<1x16xf32>
    %158 = vector.extract_strided_slice %107 {offsets = [0, 3], sizes = [16, 1], strides = [1, 1]} : vector<16x4xf32> to vector<16x1xf32>
    %159 = vector.broadcast %157 : vector<1x16xf32> to vector<16x16xf32>
    %160 = vector.broadcast %158 : vector<16x1xf32> to vector<16x16xf32>
    %161 = arith.subf %159, %160 : vector<16x16xf32>
    %162 = vector.extract_strided_slice %126 {offsets = [0, 3], sizes = [1, 1], strides = [1, 1]} : vector<1x4xf32> to vector<1x1xf32>
    %163 = math.absf %161 : vector<16x16xf32>
    %164 = vector.broadcast %162 : vector<1x1xf32> to vector<16x16xf32>
    %165 = arith.mulf %164, %163 : vector<16x16xf32>
    %166 = arith.addf %156, %165 : vector<16x16xf32>
    %167 = vector.extract_strided_slice %125 {offsets = [1, 0], sizes = [1, 4], strides = [1, 1]} : vector<2x4xf32> to vector<1x4xf32>
    %168 = vector.broadcast %167 : vector<1x4xf32> to vector<16x4xf32>
    %169 = arith.mulf %107, %168 : vector<16x4xf32>
    %cst_41 = arith.constant dense<0.000000e+00> : vector<16x16xf32>
    %170 = tpu.matmul %169, %108, %cst_41 {dimension_numbers = #tpu.dot_dimension_numbers<[1], [0], [0], [1], [0, 0, 1, 1], [], []>} : vector<16x4xf32>, vector<4x16xf32>, vector<16x16xf32> -> vector<16x16xf32>
    %171 = arith.addf %166, %170 : vector<16x16xf32>
    %cst_42 = arith.constant 0.000000e+00 : f32
    %172 = vector.broadcast %cst_42 : f32 to vector<16x16xf32>
    %173 = arith.cmpf ogt, %171, %172 : vector<16x16xf32>
    %cst_43 = arith.constant 2.000000e-01 : f32
    %174 = vector.broadcast %cst_43 : f32 to vector<16x16xf32>
    %175 = arith.mulf %174, %171 : vector<16x16xf32>
    %176 = arith.select %173, %171, %175 : vector<16x16xi1>, vector<16x16xf32>
    %cst_44 = arith.constant -1.000000e+30 : f32
    %177 = vector.broadcast %cst_44 : f32 to vector<16x16xf32>
    %178 = arith.select %6, %176, %177 : vector<16x16xi1>, vector<16x16xf32>
    %c0_45 = arith.constant 0 : index
    %c1_46 = arith.constant 1 : index
    %179 = vector.load %arg8[%c0_45, %c1_46] : memref<16x2xf32, #tpu.memory_space<vmem>>, vector<16x1xf32>
    %cst_47 = arith.constant dense<0xFF800000> : vector<16xf32>
    %180 = vector.multi_reduction <maximumf>, %178, %cst_47 [1] : vector<16x16xf32> to vector<16xf32>
    %181 = vector.shape_cast %180 : vector<16xf32> to vector<16x1xf32>
    %182 = arith.maximumf %179, %181 : vector<16x1xf32>
    %183 = arith.subf %179, %182 : vector<16x1xf32>
    %184 = math.exp %183 : vector<16x1xf32>
    %185 = vector.broadcast %182 : vector<16x1xf32> to vector<16x16xf32>
    %186 = arith.subf %178, %185 : vector<16x16xf32>
    %187 = math.exp %186 : vector<16x16xf32>
    %cst_48 = arith.constant 0.000000e+00 : f32
    %188 = vector.broadcast %cst_48 : f32 to vector<16x16xf32>
    %189 = arith.select %6, %187, %188 : vector<16x16xi1>, vector<16x16xf32>
    %c0_49 = arith.constant 0 : index
    %c1_50 = arith.constant 1 : index
    %190 = vector.load %arg9[%c0_49, %c1_50] : memref<16x2xf32, #tpu.memory_space<vmem>>, vector<16x1xf32>
    %191 = arith.mulf %184, %190 : vector<16x1xf32>
    %cst_51 = arith.constant dense<0.000000e+00> : vector<16xf32>
    %192 = vector.multi_reduction <add>, %189, %cst_51 [1] : vector<16x16xf32> to vector<16xf32>
    %193 = vector.shape_cast %192 : vector<16xf32> to vector<16x1xf32>
    %194 = arith.addf %191, %193 : vector<16x1xf32>
    %c0_52 = arith.constant 0 : index
    %c1_53 = arith.constant 1 : index
    %195 = vector.load %arg9[%c0_52, %c1_53] : memref<16x2xf32, #tpu.memory_space<vmem>>, vector<16x1xf32>
    tpu.vector_store %arg9[%c0_52, %c1_53], %194 {strides = array<i32>} : memref<16x2xf32, #tpu.memory_space<vmem>>, vector<16x1xf32>,
    %c0_54 = arith.constant 0 : index
    %c1_55 = arith.constant 1 : index
    %196 = vector.load %arg8[%c0_54, %c1_55] : memref<16x2xf32, #tpu.memory_space<vmem>>, vector<16x1xf32>
    tpu.vector_store %arg8[%c0_54, %c1_55], %182 {strides = array<i32>} : memref<16x2xf32, #tpu.memory_space<vmem>>, vector<16x1xf32>,
    %197 = arith.truncf %189 : vector<16x16xf32> to vector<16x16xbf16>
    %198 = arith.truncf %108 : vector<4x16xf32> to vector<4x16xbf16>
    %cst_56 = arith.constant dense<0.000000e+00> : vector<16x4xf32>
    %199 = tpu.matmul %197, %198, %cst_56 {dimension_numbers = #tpu.dot_dimension_numbers<[1], [1], [0], [0], [0, 0, 1, 0], [], []>} : vector<16x16xbf16>, vector<4x16xbf16>, vector<16x4xf32> -> vector<16x4xf32>
    %c0_57 = arith.constant 0 : index
    %c4 = arith.constant 4 : index
    %200 = vector.load %arg7[%c0_57, %c4] : memref<16x8xf32, #tpu.memory_space<vmem>>, vector<16x4xf32>
    %201 = vector.broadcast %184 : vector<16x1xf32> to vector<16x4xf32>
    %202 = arith.mulf %201, %200 : vector<16x4xf32>
    %203 = arith.addf %202, %199 : vector<16x4xf32>
    %c0_58 = arith.constant 0 : index
    %c4_59 = arith.constant 4 : index
    %204 = vector.load %arg7[%c0_58, %c4_59] : memref<16x8xf32, #tpu.memory_space<vmem>>, vector<16x4xf32>
    tpu.vector_store %arg7[%c0_58, %c4_59], %203 {strides = array<i32>} : memref<16x8xf32, #tpu.memory_space<vmem>>, vector<16x4xf32>,
    %c0_i32_60 = arith.constant 0 : i32
    %205 = arith.cmpi eq, %arg1, %c0_i32_60 : i32
    %206 = arith.extui %205 : i1 to i32
    %c0_i32_61 = arith.constant 0 : i32
    %207 = arith.cmpi ne, %206, %c0_i32_61 : i32
    scf.if %207 {
      %c0_62 = arith.constant 0 : index
      %c0_63 = arith.constant 0 : index
      %208 = vector.load %arg9[%c0_62, %c0_63] : memref<16x2xf32, #tpu.memory_space<vmem>>, vector<16x2xf32>
      %cst_64 = arith.constant 1.000000e-16 : f32
      %209 = vector.broadcast %cst_64 : f32 to vector<16x2xf32>
      %210 = arith.addf %208, %209 : vector<16x2xf32>
      %211 = tpu.reciprocal %210 {approx = true} : vector<16x2xf32> -> vector<16x2xf32>
      %c0_65 = arith.constant 0 : index
      %c0_66 = arith.constant 0 : index
      %212 = vector.load %arg7[%c0_65, %c0_66] : memref<16x8xf32, #tpu.memory_space<vmem>>, vector<16x4xf32>
      %213 = vector.extract_strided_slice %211 {offsets = [0, 0], sizes = [16, 1], strides = [1, 1]} : vector<16x2xf32> to vector<16x1xf32>
      %214 = vector.broadcast %213 : vector<16x1xf32> to vector<16x4xf32>
      %215 = arith.mulf %212, %214 : vector<16x4xf32>
      %c0_67 = arith.constant 0 : index
      %c0_68 = arith.constant 0 : index
      %216 = vector.load %arg7[%c0_67, %c0_68] : memref<16x8xf32, #tpu.memory_space<vmem>>, vector<16x4xf32>
      tpu.vector_store %arg7[%c0_67, %c0_68], %215 {strides = array<i32>} : memref<16x8xf32, #tpu.memory_space<vmem>>, vector<16x4xf32>,
      %c0_69 = arith.constant 0 : index
      %c4_70 = arith.constant 4 : index
      %217 = vector.load %arg7[%c0_69, %c4_70] : memref<16x8xf32, #tpu.memory_space<vmem>>, vector<16x4xf32>
      %218 = vector.extract_strided_slice %211 {offsets = [0, 1], sizes = [16, 1], strides = [1, 1]} : vector<16x2xf32> to vector<16x1xf32>
      %219 = vector.broadcast %218 : vector<16x1xf32> to vector<16x4xf32>
      %220 = arith.mulf %217, %219 : vector<16x4xf32>
      %c0_71 = arith.constant 0 : index
      %c4_72 = arith.constant 4 : index
      %221 = vector.load %arg7[%c0_71, %c4_72] : memref<16x8xf32, #tpu.memory_space<vmem>>, vector<16x4xf32>
      tpu.vector_store %arg7[%c0_71, %c4_72], %220 {strides = array<i32>} : memref<16x8xf32, #tpu.memory_space<vmem>>, vector<16x4xf32>,
    } else {
    }
    return
  }
  func.func @transform_0(%arg0: i32, %arg1: i32) -> (i32, i32) {
    %c0_i32 = arith.constant 0 : i32
    %c0_i32_0 = arith.constant 0 : i32
    return %arg0, %c0_i32 : i32, i32
  }
  func.func @transform_1(%arg0: i32, %arg1: i32) -> (i32, i32) {
    %c0_i32 = arith.constant 0 : i32
    %c0_i32_0 = arith.constant 0 : i32
    return %c0_i32, %arg1 : i32, i32
  }
  func.func @transform_2(%arg0: i32, %arg1: i32) -> (i32, i32) {
    %c0_i32 = arith.constant 0 : i32
    return %arg0, %arg1 : i32, i32
  }
  func.func @transform_3(%arg0: i32, %arg1: i32) -> (i32, i32, i32) {
    %c0_i32 = arith.constant 0 : i32
    %c0_i32_0 = arith.constant 0 : i32
    %c0_i32_1 = arith.constant 0 : i32
    %c0_i32_2 = arith.constant 0 : i32
    return %c0_i32, %c0_i32_0, %c0_i32_1 : i32, i32, i32
  }
  func.func @transform_4(%arg0: i32, %arg1: i32) -> (i32, i32, i32) {
    %c0_i32 = arith.constant 0 : i32
    %c0_i32_0 = arith.constant 0 : i32
    %c0_i32_1 = arith.constant 0 : i32
    %c0_i32_2 = arith.constant 0 : i32
    return %c0_i32, %c0_i32_0, %c0_i32_1 : i32, i32, i32
  }
  func.func @transform_5(%arg0: i32, %arg1: i32) -> (i32, i32) {
    %c0_i32 = arith.constant 0 : i32
    %c0_i32_0 = arith.constant 0 : i32
    return %arg0, %c0_i32 : i32, i32
  }
}

</mosaic_0001>

<llo_original>
// kernel: tpu_custom_call.1
$region0: #{tpu_custom_call.1}
  #allocation0 [shape = 'u32[]', space=smem, size = 0x4, offset = 0x4, fixed_abs, tag = 'smem constant byte address 0x4 - core index']
  #allocation1 [shape = 'u32[144,128]{1,0:T(1,128)}', space=vmem, size = 0x12000, scoped, tag = 'internal scratch']
  #allocation2 [shape = 'f32[16,2]{1,0:T(8,128)}', space=vmem, size = 0x2000, scoped, tag = 'scratch operand']
  #allocation3 [shape = 'f32[16,2]{1,0:T(8,128)}', space=vmem, size = 0x2000, scoped, tag = 'scratch operand']
  %s0 = inlined_call_operand.vmem [shape: f32[16,8], index: 0, kind: input, shape index: {}]
  %s1 = inlined_call_operand.vmem [shape: f32[8,16], index: 1, kind: input, shape index: {}]
  %s2 = inlined_call_operand.vmem [shape: s8[16,16], index: 2, kind: input, shape index: {}]
  %s3 = inlined_call_operand.vmem [shape: f32[2,4,3], index: 3, kind: input, shape index: {}]
  %s4 = inlined_call_operand.vmem [shape: f32[2,2,4], index: 4, kind: input, shape index: {}]
  %s5 = inlined_call_operand.vmem [shape: f32[16,8], index: 5, kind: output, shape index: {}]
  %s6 = sld [smem:[#allocation0]]
  $region38: #{tpu_custom_call.1} parent=0
    _
  %s8 = ssub.s32 1, %s6
  %s9 = scalar_select 0, %s8, %s6
  // Predicated region
  $region2: #{tpu_custom_call.1} parent=0 // pred_check
    _
  $region3: #{tpu_custom_call.1} parent=0 // pred_check_branch
    %11 = sbr.rel (0) target = $region5
  $region4: #{tpu_custom_call.1} parent=0 // pred_region
    _
  $region5: #{tpu_custom_call.1} parent=0 // pred_fallthru
    _
  // Predicated region
  $region6: #{tpu_custom_call.1} parent=0 // pred_check
    _
  $region7: #{tpu_custom_call.1} parent=0 // pred_check_branch
    %13 = sbr.rel (0) target = $region9
  $region8: #{tpu_custom_call.1} parent=0 // pred_region
    _
  $region9: #{tpu_custom_call.1} parent=0 // pred_fallthru
    _
  // Predicated region
  $region10: #{tpu_custom_call.1} parent=0 // pred_check
    _
  $region11: #{tpu_custom_call.1} parent=0 // pred_check_branch
    %15 = sbr.rel (0) target = $region13
  $region12: #{tpu_custom_call.1} parent=0 // pred_region
    _
  $region13: #{tpu_custom_call.1} parent=0 // pred_fallthru
    _
  // Predicated region
  $region14: #{tpu_custom_call.1} parent=0 // pred_check
    _
  $region15: #{tpu_custom_call.1} parent=0 // pred_check_branch
    %17 = sbr.rel (0) target = $region17
  $region16: #{tpu_custom_call.1} parent=0 // pred_region
    _
  $region17: #{tpu_custom_call.1} parent=0 // pred_fallthru
    _
  // Predicated region
  $region18: #{tpu_custom_call.1} parent=0 // pred_check
    _
  $region19: #{tpu_custom_call.1} parent=0 // pred_check_branch
    %19 = sbr.rel (0) target = $region21
  $region20: #{tpu_custom_call.1} parent=0 // pred_region
    _
  $region21: #{tpu_custom_call.1} parent=0 // pred_fallthru
    _
  %p21 = scmp.eq.s32.totalorder 0, 0
  // Predicated region
  $region22: #{tpu_custom_call.1} parent=0 // pred_check
    %p22 = pneg %p21
  $region23: #{tpu_custom_call.1} parent=0 // pred_check_branch
    %24 = sbr.rel (%p22) target = $region25
  $region24: #{tpu_custom_call.1} parent=0 // pred_region
    %vm25 = vcmask 15360
    %26 = vst.msk [vmem:[#allocation2] sm:$0xff] %vm25, -1e+30
    %27 = vst.msk [vmem:[#allocation2 + $0x8] sm:$0xff] %vm25, -1e+30
    %28 = vst.msk [vmem:[#allocation3] sm:$0xff] %vm25, 0.0
    %29 = vst.msk [vmem:[#allocation3 + $0x8] sm:$0xff] %vm25, 0.0
    %vm30 = vcmask 64512
    %31 = vst.msk [vmem:[%s5] sm:$0xff] %vm30, 0.0
    %32 = vst.msk [vmem:[%s5 + $0x8] sm:$0xff] %vm30, 0.0
  $region25: #{tpu_custom_call.1} parent=0 // pred_fallthru
    _
  %v33 = vld [vmem:[%s2] sm:$0x3]
  %v34 = vld [vmem:[%s2 + $0x2] sm:$0x3]
  %v35 = vunpack.c.0.s8 %v33
  %v36 = vunpack.c.0.s8 %v34
  %v37 = vcvt.s32.f32 %v35
  %v38 = vcvt.s32.f32 %v36
  %vm39 = vcmp.gt.f32.partialorder %v37, 0.0
  %vm40 = vcmp.gt.f32.partialorder %v38, 0.0
  %v41 = vld [vmem:[%s0] sm:$0xff]
  %v42 = vld [vmem:[%s0 + $0x8] sm:$0xff]
  %v43 = vld [vmem:[%s1] sm:$0xff]
  %v44 = vld [vmem:[%s3] sm:$0xf]
  %vm45 = vcmask 31744
  %v47 = vsel %vm45, %v41, 0
  %v50 = vsel %vm45, %v42, 0
  %vm52 = vcmask 1043456
  %v54 = vsel %vm52, %v44, 0
  %56 = vmatprep.subr.mxu0 0.0
  %57 = vmatpush1.msra.mxu0 0.0
  %58 = vmatprep.subr.mxu0 0.0
  %59 = vmatpush1.msra.mxu0 0.0
  %60 = vmatprep.subr.mxu0 0.0
  %61 = vmatpush1.msra.mxu0 0.0
  %62 = vmatprep.subr.mxu0 0.0
  %63 = vmatpush1.msra.mxu0 0.0
  %64 = vmatprep.subr.mxu0 0.0
  %65 = vmatpush1.msra.mxu0 0.0
  %66 = vmatprep.subr.mxu0 0.0
  %67 = vmatpush1.msra.mxu0 0.0
  %68 = vmatprep.subr.mxu0 0.0
  %69 = vmatpush1.msra.mxu0 0.0
  %70 = vmatprep.subr.mxu0 0.0
  %71 = vmatpush1.msra.mxu0 0.0
  %72 = vmatprep.subr.mxu0 0.0
  %73 = vmatpush1.msra.mxu0 0.0
  %74 = vmatprep.subr.mxu0 0.0
  %75 = vmatpush1.msra.mxu0 0.0
  %76 = vmatprep.subr.mxu0 0.0
  %77 = vmatpush1.msra.mxu0 0.0
  %78 = vmatprep.subr.mxu0 0.0
  %79 = vmatpush1.msra.mxu0 0.0
  %80 = vmatprep.subr.mxu0 0.0
  %81 = vmatpush1.msra.mxu0 0.0
  %82 = vmatprep.subr.mxu0 0.0
  %83 = vmatpush1.msra.mxu0 0.0
  %84 = vmatprep.subr.mxu0 0.0
  %85 = vmatpush1.msra.mxu0 0.0
  %86 = vmatprep.subr.mxu0 0.0
  %87 = vmatpush1.msra.mxu0 %v54
  %88 = vmatprep.subr.mxu0 0.0
  %89 = vmatpush2.msra.mxu0 0.0
  %90 = vmatprep.subr.mxu0 0.0
  %91 = vmatpush2.msra.mxu0 0.0
  %92 = vmatprep.subr.mxu0 0.0
  %93 = vmatpush2.msra.mxu0 0.0
  %94 = vmatprep.subr.mxu0 0.0
  %95 = vmatpush2.msra.mxu0 0.0
  %96 = vmatprep.subr.mxu0 0.0
  %97 = vmatpush2.msra.mxu0 0.0
  %98 = vmatprep.subr.mxu0 0.0
  %99 = vmatpush2.msra.mxu0 0.0
  %100 = vmatprep.subr.mxu0 0.0
  %101 = vmatpush2.msra.mxu0 0.0
  %102 = vmatprep.subr.mxu0 0.0
  %103 = vmatpush2.msra.mxu0 0.0
  %104 = vmatprep.subr.mxu0 0.0
  %105 = vmatpush2.msra.mxu0 0.0
  %106 = vmatprep.subr.mxu0 0.0
  %107 = vmatpush2.msra.mxu0 0.0
  %108 = vmatprep.subr.mxu0 0.0
  %109 = vmatpush2.msra.mxu0 0.0
  %110 = vmatprep.subr.mxu0 0.0
  %111 = vmatpush2.msra.mxu0 0.0
  %112 = vmatprep.subr.mxu0 0.0
  %113 = vmatpush2.msra.mxu0 0.0
  %114 = vmatprep.subr.mxu0 0.0
  %115 = vmatpush2.msra.mxu0 0.0
  %116 = vmatprep.subr.mxu0 0.0
  %117 = vmatpush2.msra.mxu0 0.0
  %118 = vmatprep.subr.mxu0 0.0
  %119 = vmatpush2.msra.mxu0 0.0
  %120 = vmatprep.mubr.f32.mxu0 0.0
  %121 = vmatmul.mubr.f32.gmra.mxu0 %v47
  %v122 = vpop.f32.mrf.mxu0
  %v123 = vadd.f32 0.0, %v122
  %v124 = vpop.f32.mrf.mxu0
  %125 = vmatprep.mubr.f32.mxu0 0.0
  %126 = vmatmul.mubr.f32.gmra.mxu0 %v50
  %v127 = vpop.f32.mrf.mxu0
  %v128 = vadd.f32 0.0, %v127
  %v129 = vpop.f32.mrf.mxu0
  %130 = vdwg.mxu0
  %131 = vxpose.xlu0.b32.start [1/16] %v44, 128
  %132 = vxpose.xlu0.b32.cont [2/16] 0.0, 128
  %133 = vxpose.xlu0.b32.cont [3/16] 0.0, 128
  %134 = vxpose.xlu0.b32.cont [4/16] 0.0, 128
  %135 = vxpose.xlu0.b32.cont [5/16] 0.0, 128
  %136 = vxpose.xlu0.b32.cont [6/16] 0.0, 128
  %137 = vxpose.xlu0.b32.cont [7/16] 0.0, 128
  %138 = vxpose.xlu0.b32.cont [8/16] 0.0, 128
  %139 = vxpose.xlu0.b32.cont [9/16] 0.0, 128
  %140 = vxpose.xlu0.b32.cont [10/16] 0.0, 128
  %141 = vxpose.xlu0.b32.cont [11/16] 0.0, 128
  %142 = vxpose.xlu0.b32.cont [12/16] 0.0, 128
  %143 = vxpose.xlu0.b32.cont [13/16] 0.0, 128
  %144 = vxpose.xlu0.b32.cont [14/16] 0.0, 128
  %145 = vxpose.xlu0.b32.cont [15/16] 0.0, 128
  %146 = vxpose.xlu0.b32.end [16/16] 0.0, 128
  %v147 = vpop.trf.xlu0
  %v148 = vpop.trf.xlu0
  %v149 = vpop.trf.xlu0
  %v150 = vpop.trf.xlu0
  %v151 = vpop.trf.xlu0
  %v152 = vpop.trf.xlu0
  %v153 = vpop.trf.xlu0
  %v154 = vpop.trf.xlu0
  %v155 = vpop.trf.xlu0
  %v156 = vpop.trf.xlu0
  %v157 = vpop.trf.xlu0
  %v158 = vpop.trf.xlu0
  %v159 = vpop.trf.xlu0
  %v160 = vpop.trf.xlu0
  %v161 = vpop.trf.xlu0
  %v162 = vpop.trf.xlu0
  %v164 = vsel %vm45, %v147, 0
  %v167 = vsel %vm52, %v43, 0
  %169 = vmatprep.subr.mxu0 0.0
  %170 = vmatpush1.msra.mxu0 0.0
  %171 = vmatprep.subr.mxu0 0.0
  %172 = vmatpush1.msra.mxu0 0.0
  %173 = vmatprep.subr.mxu0 0.0
  %174 = vmatpush1.msra.mxu0 0.0
  %175 = vmatprep.subr.mxu0 0.0
  %176 = vmatpush1.msra.mxu0 0.0
  %177 = vmatprep.subr.mxu0 0.0
  %178 = vmatpush1.msra.mxu0 0.0
  %179 = vmatprep.subr.mxu0 0.0
  %180 = vmatpush1.msra.mxu0 0.0
  %181 = vmatprep.subr.mxu0 0.0
  %182 = vmatpush1.msra.mxu0 0.0
  %183 = vmatprep.subr.mxu0 0.0
  %184 = vmatpush1.msra.mxu0 0.0
  %185 = vmatprep.subr.mxu0 0.0
  %186 = vmatpush1.msra.mxu0 0.0
  %187 = vmatprep.subr.mxu0 0.0
  %188 = vmatpush1.msra.mxu0 0.0
  %189 = vmatprep.subr.mxu0 0.0
  %190 = vmatpush1.msra.mxu0 0.0
  %191 = vmatprep.subr.mxu0 0.0
  %192 = vmatpush1.msra.mxu0 0.0
  %193 = vmatprep.subr.mxu0 0.0
  %194 = vmatpush1.msra.mxu0 0.0
  %195 = vmatprep.subr.mxu0 0.0
  %196 = vmatpush1.msra.mxu0 0.0
  %197 = vmatprep.subr.mxu0 0.0
  %198 = vmatpush1.msra.mxu0 0.0
  %199 = vmatprep.subr.mxu0 0.0
  %200 = vmatpush1.msra.mxu0 %v167
  %201 = vmatprep.subr.mxu0 0.0
  %202 = vmatpush2.msra.mxu0 0.0
  %203 = vmatprep.subr.mxu0 0.0
  %204 = vmatpush2.msra.mxu0 0.0
  %205 = vmatprep.subr.mxu0 0.0
  %206 = vmatpush2.msra.mxu0 0.0
  %207 = vmatprep.subr.mxu0 0.0
  %208 = vmatpush2.msra.mxu0 0.0
  %209 = vmatprep.subr.mxu0 0.0
  %210 = vmatpush2.msra.mxu0 0.0
  %211 = vmatprep.subr.mxu0 0.0
  %212 = vmatpush2.msra.mxu0 0.0
  %213 = vmatprep.subr.mxu0 0.0
  %214 = vmatpush2.msra.mxu0 0.0
  %215 = vmatprep.subr.mxu0 0.0
  %216 = vmatpush2.msra.mxu0 0.0
  %217 = vmatprep.subr.mxu0 0.0
  %218 = vmatpush2.msra.mxu0 0.0
  %219 = vmatprep.subr.mxu0 0.0
  %220 = vmatpush2.msra.mxu0 0.0
  %221 = vmatprep.subr.mxu0 0.0
  %222 = vmatpush2.msra.mxu0 0.0
  %223 = vmatprep.subr.mxu0 0.0
  %224 = vmatpush2.msra.mxu0 0.0
  %225 = vmatprep.subr.mxu0 0.0
  %226 = vmatpush2.msra.mxu0 0.0
  %227 = vmatprep.subr.mxu0 0.0
  %228 = vmatpush2.msra.mxu0 0.0
  %229 = vmatprep.subr.mxu0 0.0
  %230 = vmatpush2.msra.mxu0 0.0
  %231 = vmatprep.subr.mxu0 0.0
  %232 = vmatpush2.msra.mxu0 0.0
  %233 = vmatprep.mubr.f32.mxu0 0.0
  %234 = vmatmul.mubr.f32.gmra.mxu0 %v164
  %v235 = vpop.f32.mrf.mxu0
  %v236 = vadd.f32 0.0, %v235
  %v237 = vpop.f32.mrf.mxu0
  %238 = vdwg.mxu0
  %240 = vset.pattern.permute.xlu0 0
  %241 = vperm.xlu0 %240, %v123
  %v242 = vpop.permute.xlu0 %241
  %245 = vset.pattern.permute.xlu0 0
  %246 = vperm.xlu0 %245, %v128
  %v247 = vpop.permute.xlu0 %246
  %v249 = vlaneseq
  %v250 = vshrl.u32 %v249, 7
  %v251 = vsub.s32 1, %v250
  %v252 = vrot.slane %v236, %v251
  %v253 = vadd.f32 %v242, %v252
  %v254 = vadd.f32 %v247, %v252
  %v255 = vlaneseq
  %v256 = vshrl.u32 %v255, 7
  %v257 = vsub.s32 2, %v256
  %v258 = vrot.slane %v236, %v257
  %259 = vset.pattern.permute.xlu0 2
  %260 = vperm.xlu0 %259, %v123
  %v261 = vpop.permute.xlu0 %260
  %263 = vset.pattern.permute.xlu0 2
  %264 = vperm.xlu0 %263, %v128
  %v265 = vpop.permute.xlu0 %264
  %v267 = vsub.f32 %v258, %v261
  %v268 = vsub.f32 %v258, %v265
  %v269 = vadd.f32 %v253, %v267
  %v270 = vadd.f32 %v254, %v268
  %v271 = vld [vmem:[%s4] sm:$0x3]
  %v272 = vlaneseq
  %v273 = vshrl.u32 %v272, 7
  %v274 = vsub.s32 0, %v273
  %v275 = vrot.slane %v43, %v274
  %276 = vset.pattern.permute.xlu0 0
  %277 = vperm.xlu0 %276, %v41
  %v278 = vpop.permute.xlu0 %277
  %280 = vset.pattern.permute.xlu0 0
  %281 = vperm.xlu0 %280, %v42
  %v282 = vpop.permute.xlu0 %281
  %v284 = vsub.f32 %v275, %v278
  %v285 = vsub.f32 %v275, %v282
  %v286 = vand.u32 2147483647, %v284
  %v287 = vand.u32 2147483647, %v285
  %s289 = vtos %v271
  %v290 = vstv %s289
  %v292 = vmul.f32 %v290, %v286
  %v293 = vmul.f32 %v290, %v287
  %v294 = vadd.f32 %v269, %v292
  %v295 = vadd.f32 %v270, %v293
  %v296 = vlaneseq
  %v297 = vshrl.u32 %v296, 7
  %v298 = vsub.s32 1, %v297
  %v299 = vrot.slane %v43, %v298
  %300 = vset.pattern.permute.xlu0 1
  %301 = vperm.xlu0 %300, %v41
  %v302 = vpop.permute.xlu0 %301
  %304 = vset.pattern.permute.xlu0 1
  %305 = vperm.xlu0 %304, %v42
  %v306 = vpop.permute.xlu0 %305
  %v308 = vsub.f32 %v299, %v302
  %v309 = vsub.f32 %v299, %v306
  %v310 = vand.u32 2147483647, %v308
  %v311 = vand.u32 2147483647, %v309
  %312 = vrot.lane.b32.xlu0 %v271, 127
  %v313 = vpop.permute.xlu0 %312
  %s314 = vtos %v313
  %v315 = vstv %s314
  %v317 = vmul.f32 %v315, %v310
  %v318 = vmul.f32 %v315, %v311
  %v319 = vadd.f32 %v294, %v317
  %v320 = vadd.f32 %v295, %v318
  %v321 = vlaneseq
  %v322 = vshrl.u32 %v321, 7
  %v323 = vsub.s32 2, %v322
  %v324 = vrot.slane %v43, %v323
  %325 = vset.pattern.permute.xlu0 2
  %326 = vperm.xlu0 %325, %v41
  %v327 = vpop.permute.xlu0 %326
  %329 = vset.pattern.permute.xlu0 2
  %330 = vperm.xlu0 %329, %v42
  %v331 = vpop.permute.xlu0 %330
  %v333 = vsub.f32 %v324, %v327
  %v334 = vsub.f32 %v324, %v331
  %v335 = vand.u32 2147483647, %v333
  %v336 = vand.u32 2147483647, %v334
  %337 = vrot.lane.b32.xlu0 %v271, 126
  %v338 = vpop.permute.xlu0 %337
  %s339 = vtos %v338
  %v340 = vstv %s339
  %v342 = vmul.f32 %v340, %v335
  %v343 = vmul.f32 %v340, %v336
  %v344 = vadd.f32 %v319, %v342
  %v345 = vadd.f32 %v320, %v343
  %v346 = vlaneseq
  %v347 = vshrl.u32 %v346, 7
  %v348 = vsub.s32 3, %v347
  %v349 = vrot.slane %v43, %v348
  %350 = vset.pattern.permute.xlu0 3
  %351 = vperm.xlu0 %350, %v41
  %v352 = vpop.permute.xlu0 %351
  %354 = vset.pattern.permute.xlu0 3
  %355 = vperm.xlu0 %354, %v42
  %v356 = vpop.permute.xlu0 %355
  %v358 = vsub.f32 %v349, %v352
  %v359 = vsub.f32 %v349, %v356
  %v360 = vand.u32 2147483647, %v358
  %v361 = vand.u32 2147483647, %v359
  %362 = vrot.lane.b32.xlu0 %v271, 125
  %v363 = vpop.permute.xlu0 %362
  %s364 = vtos %v363
  %v365 = vstv %s364
  %v367 = vmul.f32 %v365, %v360
  %v368 = vmul.f32 %v365, %v361
  %v369 = vadd.f32 %v344, %v367
  %v370 = vadd.f32 %v345, %v368
  %v371 = vlaneseq
  %v372 = vshrl.u32 %v371, 7
  %v373 = vsub.s32 1, %v372
  %v374 = vrot.slane %v271, %v373
  %v375 = vmul.f32 %v41, %v374
  %v376 = vmul.f32 %v42, %v374
  %v378 = vsel %vm45, %v375, 0
  %v381 = vsel %vm45, %v376, 0
  %383 = vmatprep.subr.mxu0 0.0
  %384 = vmatpush1.msra.mxu0 0.0
  %385 = vmatprep.subr.mxu0 0.0
  %386 = vmatpush1.msra.mxu0 0.0
  %387 = vmatprep.subr.mxu0 0.0
  %388 = vmatpush1.msra.mxu0 0.0
  %389 = vmatprep.subr.mxu0 0.0
  %390 = vmatpush1.msra.mxu0 0.0
  %391 = vmatprep.subr.mxu0 0.0
  %392 = vmatpush1.msra.mxu0 0.0
  %393 = vmatprep.subr.mxu0 0.0
  %394 = vmatpush1.msra.mxu0 0.0
  %395 = vmatprep.subr.mxu0 0.0
  %396 = vmatpush1.msra.mxu0 0.0
  %397 = vmatprep.subr.mxu0 0.0
  %398 = vmatpush1.msra.mxu0 0.0
  %399 = vmatprep.subr.mxu0 0.0
  %400 = vmatpush1.msra.mxu0 0.0
  %401 = vmatprep.subr.mxu0 0.0
  %402 = vmatpush1.msra.mxu0 0.0
  %403 = vmatprep.subr.mxu0 0.0
  %404 = vmatpush1.msra.mxu0 0.0
  %405 = vmatprep.subr.mxu0 0.0
  %406 = vmatpush1.msra.mxu0 0.0
  %407 = vmatprep.subr.mxu0 0.0
  %408 = vmatpush1.msra.mxu0 0.0
  %409 = vmatprep.subr.mxu0 0.0
  %410 = vmatpush1.msra.mxu0 0.0
  %411 = vmatprep.subr.mxu0 0.0
  %412 = vmatpush1.msra.mxu0 0.0
  %413 = vmatprep.subr.mxu0 0.0
  %414 = vmatpush1.msra.mxu0 %v167
  %415 = vmatprep.subr.mxu0 0.0
  %416 = vmatpush2.msra.mxu0 0.0
  %417 = vmatprep.subr.mxu0 0.0
  %418 = vmatpush2.msra.mxu0 0.0
  %419 = vmatprep.subr.mxu0 0.0
  %420 = vmatpush2.msra.mxu0 0.0
  %421 = vmatprep.subr.mxu0 0.0
  %422 = vmatpush2.msra.mxu0 0.0
  %423 = vmatprep.subr.mxu0 0.0
  %424 = vmatpush2.msra.mxu0 0.0
  %425 = vmatprep.subr.mxu0 0.0
  %426 = vmatpush2.msra.mxu0 0.0
  %427 = vmatprep.subr.mxu0 0.0
  %428 = vmatpush2.msra.mxu0 0.0
  %429 = vmatprep.subr.mxu0 0.0
  %430 = vmatpush2.msra.mxu0 0.0
  %431 = vmatprep.subr.mxu0 0.0
  %432 = vmatpush2.msra.mxu0 0.0
  %433 = vmatprep.subr.mxu0 0.0
  %434 = vmatpush2.msra.mxu0 0.0
  %435 = vmatprep.subr.mxu0 0.0
  %436 = vmatpush2.msra.mxu0 0.0
  %437 = vmatprep.subr.mxu0 0.0
  %438 = vmatpush2.msra.mxu0 0.0
  %439 = vmatprep.subr.mxu0 0.0
  %440 = vmatpush2.msra.mxu0 0.0
  %441 = vmatprep.subr.mxu0 0.0
  %442 = vmatpush2.msra.mxu0 0.0
  %443 = vmatprep.subr.mxu0 0.0
  %444 = vmatpush2.msra.mxu0 0.0
  %445 = vmatprep.subr.mxu0 0.0
  %446 = vmatpush2.msra.mxu0 0.0
  %447 = vmatprep.mubr.f32.mxu0 0.0
  %448 = vmatmul.mubr.f32.gmra.mxu0 %v378
  %v449 = vpop.f32.mrf.mxu0
  %v450 = vadd.f32 0.0, %v449
  %v451 = vpop.f32.mrf.mxu0
  %452 = vmatprep.mubr.f32.mxu0 0.0
  %453 = vmatmul.mubr.f32.gmra.mxu0 %v381
  %v454 = vpop.f32.mrf.mxu0
  %v455 = vadd.f32 0.0, %v454
  %v456 = vpop.f32.mrf.mxu0
  %457 = vdwg.mxu0
  %v458 = vadd.f32 %v369, %v450
  %v459 = vadd.f32 %v370, %v455
  %vm460 = vcmp.gt.f32.partialorder %v458, 0.0
  %vm461 = vcmp.gt.f32.partialorder %v459, 0.0
  %v462 = vmul.f32 %v458, 0.2
  %v463 = vmul.f32 %v459, 0.2
  %v464 = vsel %vm460, %v458, %v462
  %v465 = vsel %vm461, %v459, %v463
  %v466 = vsel %vm39, %v464, -1e+30
  %v467 = vsel %vm40, %v465, -1e+30
  %v468 = vld [vmem:[#allocation2] sm:$0xff]
  %v469 = vld [vmem:[#allocation2 + $0x8] sm:$0xff]
  %vm470 = vcmask 130048
  %v471 = vsel %vm470, %v466, -inf
  %472 = vmax.xlane.f32.xlu0 %v471
  %v473 = vpop.xlane.xlu0 %472
  %v474 = vsel %vm470, %v467, -inf
  %475 = vmax.xlane.f32.xlu0 %v474
  %v476 = vpop.xlane.xlu0 %475
  %v477 = vmax.f32 %v468, %v473
  %v478 = vmax.f32 %v469, %v476
  %v479 = vsub.f32 %v468, %v477
  %v480 = vsub.f32 %v469, %v478
  %v481 = vmul.f32 %v479, 1.442695
  %v482 = vpow.pop %v481
  %v483 = vmul.f32 %v480, 1.442695
  %v484 = vpow.pop %v483
  %486 = vset.pattern.permute.xlu0 0
  %487 = vperm.xlu0 %486, %v477
  %v488 = vpop.permute.xlu0 %487
  %491 = vset.pattern.permute.xlu0 0
  %492 = vperm.xlu0 %491, %v478
  %v493 = vpop.permute.xlu0 %492
  %v495 = vsub.f32 %v466, %v488
  %v496 = vsub.f32 %v467, %v493
  %v497 = vmul.f32 %v495, 1.442695
  %v498 = vpow.pop %v497
  %v499 = vmul.f32 %v496, 1.442695
  %v500 = vpow.pop %v499
  %v501 = vsel %vm39, %v498, 0.0
  %v502 = vsel %vm40, %v500, 0.0
  %v503 = vld [vmem:[#allocation3] sm:$0xff]
  %v504 = vld [vmem:[#allocation3 + $0x8] sm:$0xff]
  %v505 = vmul.f32 %v482, %v503
  %v506 = vmul.f32 %v484, %v504
  %v507 = vsel %vm470, %v501, 0.0
  %508 = vadd.xlane.f32.xlu0 %v507
  %v509 = vpop.xlane.xlu0 %508
  %v510 = vsel %vm470, %v502, 0.0
  %511 = vadd.xlane.f32.xlu0 %v510
  %v512 = vpop.xlane.xlu0 %511
  %v513 = vadd.f32 %v505, %v509
  %v514 = vadd.f32 %v506, %v512
  %vm515 = vcmask 7168
  %516 = vst.msk [vmem:[#allocation3] sm:$0xff] %vm515, %v513
  %517 = vst.msk [vmem:[#allocation3 + $0x8] sm:$0xff] %vm515, %v514
  %518 = vst.msk [vmem:[#allocation2] sm:$0xff] %vm515, %v477
  %519 = vst.msk [vmem:[#allocation2 + $0x8] sm:$0xff] %vm515, %v478
  %v520 = vpack.c.bf16 %v502, %v501
  %v521 = vpack.c.bf16 %v43, %v43
  %v523 = vsel %vm470, %v520, 0
  %v526 = vsel %vm470, %v521, 0
  %528 = vmatprep.subr.bf16.mxu0 0
  %529 = vmatpush1.bf16.xpose.msra.mxu0 0
  %530 = vmatprep.subr.bf16.mxu0 0
  %531 = vmatpush1.bf16.xpose.msra.mxu0 0
  %532 = vmatprep.subr.bf16.mxu0 0
  %533 = vmatpush1.bf16.xpose.msra.mxu0 0
  %534 = vmatprep.subr.bf16.mxu0 0
  %535 = vmatpush1.bf16.xpose.msra.mxu0 0
  %536 = vmatprep.subr.bf16.mxu0 0
  %537 = vmatpush1.bf16.xpose.msra.mxu0 0
  %538 = vmatprep.subr.bf16.mxu0 0
  %539 = vmatpush1.bf16.xpose.msra.mxu0 0
  %540 = vmatprep.subr.bf16.mxu0 0
  %541 = vmatpush1.bf16.xpose.msra.mxu0 0
  %542 = vmatprep.subr.bf16.mxu0 0
  %543 = vmatpush1.bf16.xpose.msra.mxu0 %v526
  %544 = vmatprep.subr.bf16.mxu0 0
  %545 = vmatpush2.bf16.xpose.msra.mxu0 0
  %546 = vmatprep.subr.bf16.mxu0 0
  %547 = vmatpush2.bf16.xpose.msra.mxu0 0
  %548 = vmatprep.subr.bf16.mxu0 0
  %549 = vmatpush2.bf16.xpose.msra.mxu0 0
  %550 = vmatprep.subr.bf16.mxu0 0
  %551 = vmatpush2.bf16.xpose.msra.mxu0 0
  %552 = vmatprep.subr.bf16.mxu0 0
  %553 = vmatpush2.bf16.xpose.msra.mxu0 0
  %554 = vmatprep.subr.bf16.mxu0 0
  %555 = vmatpush2.bf16.xpose.msra.mxu0 0
  %556 = vmatprep.subr.bf16.mxu0 0
  %557 = vmatpush2.bf16.xpose.msra.mxu0 0
  %558 = vmatprep.subr.bf16.mxu0 0
  %559 = vmatpush2.bf16.xpose.msra.mxu0 0
  %560 = vmatprep.mubr.bf16.mxu0 0
  %561 = vmatmul.mubr.bf16.gmra.mxu0 %v523
  %v562 = vpop.f32.mrf.mxu0
  %v563 = vadd.f32 0.0, %v562
  %v564 = vpop.f32.mrf.mxu0
  %v565 = vpop.f32.mrf.mxu0
  %v566 = vadd.f32 0.0, %v565
  %v567 = vpop.f32.mrf.mxu0
  %568 = vdwg.mxu0
  %v569 = vld [vmem:[%s5] sm:$0xff]
  %v570 = vld [vmem:[%s5 + $0x8] sm:$0xff]
  %572 = vset.pattern.permute.xlu0 0
  %573 = vperm.xlu0 %572, %v482
  %v574 = vpop.permute.xlu0 %573
  %577 = vset.pattern.permute.xlu0 0
  %578 = vperm.xlu0 %577, %v484
  %v579 = vpop.permute.xlu0 %578
  %v581 = vmul.f32 %v574, %v569
  %v582 = vmul.f32 %v579, %v570
  %v583 = vadd.f32 %v581, %v563
  %v584 = vadd.f32 %v582, %v566
  %585 = vst.msk [vmem:[%s5] sm:$0xff] %vm45, %v583
  %586 = vst.msk [vmem:[%s5 + $0x8] sm:$0xff] %vm45, %v584
  %s587 = scalar_lea.vmem %s3, 4
  %v588 = vld [vmem:[%s587] sm:$0xf]
  %589 = vrot.lane.b32.xlu0 %v41, 124
  %v590 = vpop.permute.xlu0 %589
  %591 = vrot.lane.b32.xlu0 %v42, 124
  %v592 = vpop.permute.xlu0 %591
  %v593 = vsel %vm45, %v590, 0
  %v595 = vsel %vm45, %v592, 0
  %v598 = vsel %vm52, %v588, 0
  %600 = vmatprep.subr.mxu0 0.0
  %601 = vmatpush1.msra.mxu0 0.0
  %602 = vmatprep.subr.mxu0 0.0
  %603 = vmatpush1.msra.mxu0 0.0
  %604 = vmatprep.subr.mxu0 0.0
  %605 = vmatpush1.msra.mxu0 0.0
  %606 = vmatprep.subr.mxu0 0.0
  %607 = vmatpush1.msra.mxu0 0.0
  %608 = vmatprep.subr.mxu0 0.0
  %609 = vmatpush1.msra.mxu0 0.0
  %610 = vmatprep.subr.mxu0 0.0
  %611 = vmatpush1.msra.mxu0 0.0
  %612 = vmatprep.subr.mxu0 0.0
  %613 = vmatpush1.msra.mxu0 0.0
  %614 = vmatprep.subr.mxu0 0.0
  %615 = vmatpush1.msra.mxu0 0.0
  %616 = vmatprep.subr.mxu0 0.0
  %617 = vmatpush1.msra.mxu0 0.0
  %618 = vmatprep.subr.mxu0 0.0
  %619 = vmatpush1.msra.mxu0 0.0
  %620 = vmatprep.subr.mxu0 0.0
  %621 = vmatpush1.msra.mxu0 0.0
  %622 = vmatprep.subr.mxu0 0.0
  %623 = vmatpush1.msra.mxu0 0.0
  %624 = vmatprep.subr.mxu0 0.0
  %625 = vmatpush1.msra.mxu0 0.0
  %626 = vmatprep.subr.mxu0 0.0
  %627 = vmatpush1.msra.mxu0 0.0
  %628 = vmatprep.subr.mxu0 0.0
  %629 = vmatpush1.msra.mxu0 0.0
  %630 = vmatprep.subr.mxu0 0.0
  %631 = vmatpush1.msra.mxu0 %v598
  %632 = vmatprep.subr.mxu0 0.0
  %633 = vmatpush2.msra.mxu0 0.0
  %634 = vmatprep.subr.mxu0 0.0
  %635 = vmatpush2.msra.mxu0 0.0
  %636 = vmatprep.subr.mxu0 0.0
  %637 = vmatpush2.msra.mxu0 0.0
  %638 = vmatprep.subr.mxu0 0.0
  %639 = vmatpush2.msra.mxu0 0.0
  %640 = vmatprep.subr.mxu0 0.0
  %641 = vmatpush2.msra.mxu0 0.0
  %642 = vmatprep.subr.mxu0 0.0
  %643 = vmatpush2.msra.mxu0 0.0
  %644 = vmatprep.subr.mxu0 0.0
  %645 = vmatpush2.msra.mxu0 0.0
  %646 = vmatprep.subr.mxu0 0.0
  %647 = vmatpush2.msra.mxu0 0.0
  %648 = vmatprep.subr.mxu0 0.0
  %649 = vmatpush2.msra.mxu0 0.0
  %650 = vmatprep.subr.mxu0 0.0
  %651 = vmatpush2.msra.mxu0 0.0
  %652 = vmatprep.subr.mxu0 0.0
  %653 = vmatpush2.msra.mxu0 0.0
  %654 = vmatprep.subr.mxu0 0.0
  %655 = vmatpush2.msra.mxu0 0.0
  %656 = vmatprep.subr.mxu0 0.0
  %657 = vmatpush2.msra.mxu0 0.0
  %658 = vmatprep.subr.mxu0 0.0
  %659 = vmatpush2.msra.mxu0 0.0
  %660 = vmatprep.subr.mxu0 0.0
  %661 = vmatpush2.msra.mxu0 0.0
  %662 = vmatprep.subr.mxu0 0.0
  %663 = vmatpush2.msra.mxu0 0.0
  %664 = vmatprep.mubr.f32.mxu0 0.0
  %665 = vmatmul.mubr.f32.gmra.mxu0 %v593
  %v666 = vpop.f32.mrf.mxu0
  %v667 = vadd.f32 0.0, %v666
  %v668 = vpop.f32.mrf.mxu0
  %669 = vmatprep.mubr.f32.mxu0 0.0
  %670 = vmatmul.mubr.f32.gmra.mxu0 %v595
  %v671 = vpop.f32.mrf.mxu0
  %v672 = vadd.f32 0.0, %v671
  %v673 = vpop.f32.mrf.mxu0
  %674 = vdwg.mxu0
  %675 = vxpose.xlu0.b32.start [1/16] %v588, 128
  %676 = vxpose.xlu0.b32.cont [2/16] 0.0, 128
  %677 = vxpose.xlu0.b32.cont [3/16] 0.0, 128
  %678 = vxpose.xlu0.b32.cont [4/16] 0.0, 128
  %679 = vxpose.xlu0.b32.cont [5/16] 0.0, 128
  %680 = vxpose.xlu0.b32.cont [6/16] 0.0, 128
  %681 = vxpose.xlu0.b32.cont [7/16] 0.0, 128
  %682 = vxpose.xlu0.b32.cont [8/16] 0.0, 128
  %683 = vxpose.xlu0.b32.cont [9/16] 0.0, 128
  %684 = vxpose.xlu0.b32.cont [10/16] 0.0, 128
  %685 = vxpose.xlu0.b32.cont [11/16] 0.0, 128
  %686 = vxpose.xlu0.b32.cont [12/16] 0.0, 128
  %687 = vxpose.xlu0.b32.cont [13/16] 0.0, 128
  %688 = vxpose.xlu0.b32.cont [14/16] 0.0, 128
  %689 = vxpose.xlu0.b32.cont [15/16] 0.0, 128
  %690 = vxpose.xlu0.b32.end [16/16] 0.0, 128
  %v691 = vpop.trf.xlu0
  %v692 = vpop.trf.xlu0
  %v693 = vpop.trf.xlu0
  %v694 = vpop.trf.xlu0
  %v695 = vpop.trf.xlu0
  %v696 = vpop.trf.xlu0
  %v697 = vpop.trf.xlu0
  %v698 = vpop.trf.xlu0
  %v699 = vpop.trf.xlu0
  %v700 = vpop.trf.xlu0
  %v701 = vpop.trf.xlu0
  %v702 = vpop.trf.xlu0
  %v703 = vpop.trf.xlu0
  %v704 = vpop.trf.xlu0
  %v705 = vpop.trf.xlu0
  %v706 = vpop.trf.xlu0
  %v707 = vrot.slane %v43, 4
  %v709 = vsel %vm45, %v691, 0
  %v711 = vsel %vm52, %v707, 0
  %713 = vmatprep.subr.mxu0 0.0
  %714 = vmatpush1.msra.mxu0 0.0
  %715 = vmatprep.subr.mxu0 0.0
  %716 = vmatpush1.msra.mxu0 0.0
  %717 = vmatprep.subr.mxu0 0.0
  %718 = vmatpush1.msra.mxu0 0.0
  %719 = vmatprep.subr.mxu0 0.0
  %720 = vmatpush1.msra.mxu0 0.0
  %721 = vmatprep.subr.mxu0 0.0
  %722 = vmatpush1.msra.mxu0 0.0
  %723 = vmatprep.subr.mxu0 0.0
  %724 = vmatpush1.msra.mxu0 0.0
  %725 = vmatprep.subr.mxu0 0.0
  %726 = vmatpush1.msra.mxu0 0.0
  %727 = vmatprep.subr.mxu0 0.0
  %728 = vmatpush1.msra.mxu0 0.0
  %729 = vmatprep.subr.mxu0 0.0
  %730 = vmatpush1.msra.mxu0 0.0
  %731 = vmatprep.subr.mxu0 0.0
  %732 = vmatpush1.msra.mxu0 0.0
  %733 = vmatprep.subr.mxu0 0.0
  %734 = vmatpush1.msra.mxu0 0.0
  %735 = vmatprep.subr.mxu0 0.0
  %736 = vmatpush1.msra.mxu0 0.0
  %737 = vmatprep.subr.mxu0 0.0
  %738 = vmatpush1.msra.mxu0 0.0
  %739 = vmatprep.subr.mxu0 0.0
  %740 = vmatpush1.msra.mxu0 0.0
  %741 = vmatprep.subr.mxu0 0.0
  %742 = vmatpush1.msra.mxu0 0.0
  %743 = vmatprep.subr.mxu0 0.0
  %744 = vmatpush1.msra.mxu0 %v711
  %745 = vmatprep.subr.mxu0 0.0
  %746 = vmatpush2.msra.mxu0 0.0
  %747 = vmatprep.subr.mxu0 0.0
  %748 = vmatpush2.msra.mxu0 0.0
  %749 = vmatprep.subr.mxu0 0.0
  %750 = vmatpush2.msra.mxu0 0.0
  %751 = vmatprep.subr.mxu0 0.0
  %752 = vmatpush2.msra.mxu0 0.0
  %753 = vmatprep.subr.mxu0 0.0
  %754 = vmatpush2.msra.mxu0 0.0
  %755 = vmatprep.subr.mxu0 0.0
  %756 = vmatpush2.msra.mxu0 0.0
  %757 = vmatprep.subr.mxu0 0.0
  %758 = vmatpush2.msra.mxu0 0.0
  %759 = vmatprep.subr.mxu0 0.0
  %760 = vmatpush2.msra.mxu0 0.0
  %761 = vmatprep.subr.mxu0 0.0
  %762 = vmatpush2.msra.mxu0 0.0
  %763 = vmatprep.subr.mxu0 0.0
  %764 = vmatpush2.msra.mxu0 0.0
  %765 = vmatprep.subr.mxu0 0.0
  %766 = vmatpush2.msra.mxu0 0.0
  %767 = vmatprep.subr.mxu0 0.0
  %768 = vmatpush2.msra.mxu0 0.0
  %769 = vmatprep.subr.mxu0 0.0
  %770 = vmatpush2.msra.mxu0 0.0
  %771 = vmatprep.subr.mxu0 0.0
  %772 = vmatpush2.msra.mxu0 0.0
  %773 = vmatprep.subr.mxu0 0.0
  %774 = vmatpush2.msra.mxu0 0.0
  %775 = vmatprep.subr.mxu0 0.0
  %776 = vmatpush2.msra.mxu0 0.0
  %777 = vmatprep.mubr.f32.mxu0 0.0
  %778 = vmatmul.mubr.f32.gmra.mxu0 %v709
  %v779 = vpop.f32.mrf.mxu0
  %v780 = vadd.f32 0.0, %v779
  %v781 = vpop.f32.mrf.mxu0
  %782 = vdwg.mxu0
  %784 = vset.pattern.permute.xlu0 0
  %785 = vperm.xlu0 %784, %v667
  %v786 = vpop.permute.xlu0 %785
  %789 = vset.pattern.permute.xlu0 0
  %790 = vperm.xlu0 %789, %v672
  %v791 = vpop.permute.xlu0 %790
  %v793 = vlaneseq
  %v794 = vshrl.u32 %v793, 7
  %v795 = vsub.s32 1, %v794
  %v796 = vrot.slane %v780, %v795
  %v797 = vadd.f32 %v786, %v796
  %v798 = vadd.f32 %v791, %v796
  %v799 = vlaneseq
  %v800 = vshrl.u32 %v799, 7
  %v801 = vsub.s32 2, %v800
  %v802 = vrot.slane %v780, %v801
  %803 = vset.pattern.permute.xlu0 2
  %804 = vperm.xlu0 %803, %v667
  %v805 = vpop.permute.xlu0 %804
  %807 = vset.pattern.permute.xlu0 2
  %808 = vperm.xlu0 %807, %v672
  %v809 = vpop.permute.xlu0 %808
  %v811 = vsub.f32 %v802, %v805
  %v812 = vsub.f32 %v802, %v809
  %v813 = vadd.f32 %v797, %v811
  %v814 = vadd.f32 %v798, %v812
  %s815 = scalar_lea.vmem %s4, 2
  %v816 = vld [vmem:[%s815] sm:$0x3]
  %v817 = vlaneseq
  %v818 = vshrl.u32 %v817, 7
  %v819 = vsub.s32 4, %v818
  %v820 = vrot.slane %v43, %v819
  %821 = vset.pattern.permute.xlu0 4
  %822 = vperm.xlu0 %821, %v41
  %v823 = vpop.permute.xlu0 %822
  %825 = vset.pattern.permute.xlu0 4
  %826 = vperm.xlu0 %825, %v42
  %v827 = vpop.permute.xlu0 %826
  %v829 = vsub.f32 %v820, %v823
  %v830 = vsub.f32 %v820, %v827
  %v831 = vand.u32 2147483647, %v829
  %v832 = vand.u32 2147483647, %v830
  %s834 = vtos %v816
  %v835 = vstv %s834
  %v837 = vmul.f32 %v835, %v831
  %v838 = vmul.f32 %v835, %v832
  %v839 = vadd.f32 %v813, %v837
  %v840 = vadd.f32 %v814, %v838
  %v841 = vlaneseq
  %v842 = vshrl.u32 %v841, 7
  %v843 = vsub.s32 5, %v842
  %v844 = vrot.slane %v43, %v843
  %845 = vset.pattern.permute.xlu0 5
  %846 = vperm.xlu0 %845, %v41
  %v847 = vpop.permute.xlu0 %846
  %849 = vset.pattern.permute.xlu0 5
  %850 = vperm.xlu0 %849, %v42
  %v851 = vpop.permute.xlu0 %850
  %v853 = vsub.f32 %v844, %v847
  %v854 = vsub.f32 %v844, %v851
  %v855 = vand.u32 2147483647, %v853
  %v856 = vand.u32 2147483647, %v854
  %857 = vrot.lane.b32.xlu0 %v816, 127
  %v858 = vpop.permute.xlu0 %857
  %s859 = vtos %v858
  %v860 = vstv %s859
  %v862 = vmul.f32 %v860, %v855
  %v863 = vmul.f32 %v860, %v856
  %v864 = vadd.f32 %v839, %v862
  %v865 = vadd.f32 %v840, %v863
  %v866 = vlaneseq
  %v867 = vshrl.u32 %v866, 7
  %v868 = vsub.s32 6, %v867
  %v869 = vrot.slane %v43, %v868
  %870 = vset.pattern.permute.xlu0 6
  %871 = vperm.xlu0 %870, %v41
  %v872 = vpop.permute.xlu0 %871
  %874 = vset.pattern.permute.xlu0 6
  %875 = vperm.xlu0 %874, %v42
  %v876 = vpop.permute.xlu0 %875
  %v878 = vsub.f32 %v869, %v872
  %v879 = vsub.f32 %v869, %v876
  %v880 = vand.u32 2147483647, %v878
  %v881 = vand.u32 2147483647, %v879
  %882 = vrot.lane.b32.xlu0 %v816, 126
  %v883 = vpop.permute.xlu0 %882
  %s884 = vtos %v883
  %v885 = vstv %s884
  %v887 = vmul.f32 %v885, %v880
  %v888 = vmul.f32 %v885, %v881
  %v889 = vadd.f32 %v864, %v887
  %v890 = vadd.f32 %v865, %v888
  %v891 = vlaneseq
  %v892 = vshrl.u32 %v891, 7
  %v893 = vsub.s32 7, %v892
  %v894 = vrot.slane %v43, %v893
  %895 = vset.pattern.permute.xlu0 7
  %896 = vperm.xlu0 %895, %v41
  %v897 = vpop.permute.xlu0 %896
  %899 = vset.pattern.permute.xlu0 7
  %900 = vperm.xlu0 %899, %v42
  %v901 = vpop.permute.xlu0 %900
  %v903 = vsub.f32 %v894, %v897
  %v904 = vsub.f32 %v894, %v901
  %v905 = vand.u32 2147483647, %v903
  %v906 = vand.u32 2147483647, %v904
  %907 = vrot.lane.b32.xlu0 %v816, 125
  %v908 = vpop.permute.xlu0 %907
  %s909 = vtos %v908
  %v910 = vstv %s909
  %v912 = vmul.f32 %v910, %v905
  %v913 = vmul.f32 %v910, %v906
  %v914 = vadd.f32 %v889, %v912
  %v915 = vadd.f32 %v890, %v913
  %v916 = vlaneseq
  %v917 = vshrl.u32 %v916, 7
  %v918 = vsub.s32 1, %v917
  %v919 = vrot.slane %v816, %v918
  %921 = vrot.lane.b32.xlu0 %v919, 4
  %v922 = vpop.permute.xlu0 %921
  %v924 = vmul.f32 %v41, %v922
  %v925 = vmul.f32 %v42, %v922
  %928 = vrot.lane.b32.xlu0 %v924, 124
  %v929 = vpop.permute.xlu0 %928
  %930 = vrot.lane.b32.xlu0 %v925, 124
  %v931 = vpop.permute.xlu0 %930
  %v932 = vsel %vm45, %v929, 0
  %v934 = vsel %vm45, %v931, 0
  %936 = vmatprep.subr.mxu0 0.0
  %937 = vmatpush1.msra.mxu0 0.0
  %938 = vmatprep.subr.mxu0 0.0
  %939 = vmatpush1.msra.mxu0 0.0
  %940 = vmatprep.subr.mxu0 0.0
  %941 = vmatpush1.msra.mxu0 0.0
  %942 = vmatprep.subr.mxu0 0.0
  %943 = vmatpush1.msra.mxu0 0.0
  %944 = vmatprep.subr.mxu0 0.0
  %945 = vmatpush1.msra.mxu0 0.0
  %946 = vmatprep.subr.mxu0 0.0
  %947 = vmatpush1.msra.mxu0 0.0
  %948 = vmatprep.subr.mxu0 0.0
  %949 = vmatpush1.msra.mxu0 0.0
  %950 = vmatprep.subr.mxu0 0.0
  %951 = vmatpush1.msra.mxu0 0.0
  %952 = vmatprep.subr.mxu0 0.0
  %953 = vmatpush1.msra.mxu0 0.0
  %954 = vmatprep.subr.mxu0 0.0
  %955 = vmatpush1.msra.mxu0 0.0
  %956 = vmatprep.subr.mxu0 0.0
  %957 = vmatpush1.msra.mxu0 0.0
  %958 = vmatprep.subr.mxu0 0.0
  %959 = vmatpush1.msra.mxu0 0.0
  %960 = vmatprep.subr.mxu0 0.0
  %961 = vmatpush1.msra.mxu0 0.0
  %962 = vmatprep.subr.mxu0 0.0
  %963 = vmatpush1.msra.mxu0 0.0
  %964 = vmatprep.subr.mxu0 0.0
  %965 = vmatpush1.msra.mxu0 0.0
  %966 = vmatprep.subr.mxu0 0.0
  %967 = vmatpush1.msra.mxu0 %v711
  %968 = vmatprep.subr.mxu0 0.0
  %969 = vmatpush2.msra.mxu0 0.0
  %970 = vmatprep.subr.mxu0 0.0
  %971 = vmatpush2.msra.mxu0 0.0
  %972 = vmatprep.subr.mxu0 0.0
  %973 = vmatpush2.msra.mxu0 0.0
  %974 = vmatprep.subr.mxu0 0.0
  %975 = vmatpush2.msra.mxu0 0.0
  %976 = vmatprep.subr.mxu0 0.0
  %977 = vmatpush2.msra.mxu0 0.0
  %978 = vmatprep.subr.mxu0 0.0
  %979 = vmatpush2.msra.mxu0 0.0
  %980 = vmatprep.subr.mxu0 0.0
  %981 = vmatpush2.msra.mxu0 0.0
  %982 = vmatprep.subr.mxu0 0.0
  %983 = vmatpush2.msra.mxu0 0.0
  %984 = vmatprep.subr.mxu0 0.0
  %985 = vmatpush2.msra.mxu0 0.0
  %986 = vmatprep.subr.mxu0 0.0
  %987 = vmatpush2.msra.mxu0 0.0
  %988 = vmatprep.subr.mxu0 0.0
  %989 = vmatpush2.msra.mxu0 0.0
  %990 = vmatprep.subr.mxu0 0.0
  %991 = vmatpush2.msra.mxu0 0.0
  %992 = vmatprep.subr.mxu0 0.0
  %993 = vmatpush2.msra.mxu0 0.0
  %994 = vmatprep.subr.mxu0 0.0
  %995 = vmatpush2.msra.mxu0 0.0
  %996 = vmatprep.subr.mxu0 0.0
  %997 = vmatpush2.msra.mxu0 0.0
  %998 = vmatprep.subr.mxu0 0.0
  %999 = vmatpush2.msra.mxu0 0.0
  %1000 = vmatprep.mubr.f32.mxu0 0.0
  %1001 = vmatmul.mubr.f32.gmra.mxu0 %v932
  %v1002 = vpop.f32.mrf.mxu0
  %v1003 = vadd.f32 0.0, %v1002
  %v1004 = vpop.f32.mrf.mxu0
  %1005 = vmatprep.mubr.f32.mxu0 0.0
  %1006 = vmatmul.mubr.f32.gmra.mxu0 %v934
  %v1007 = vpop.f32.mrf.mxu0
  %v1008 = vadd.f32 0.0, %v1007
  %v1009 = vpop.f32.mrf.mxu0
  %1010 = vdwg.mxu0
  %v1011 = vadd.f32 %v914, %v1003
  %v1012 = vadd.f32 %v915, %v1008
  %vm1013 = vcmp.gt.f32.partialorder %v1011, 0.0
  %vm1014 = vcmp.gt.f32.partialorder %v1012, 0.0
  %v1015 = vmul.f32 %v1011, 0.2
  %v1016 = vmul.f32 %v1012, 0.2
  %v1017 = vsel %vm1013, %v1011, %v1015
  %v1018 = vsel %vm1014, %v1012, %v1016
  %v1019 = vsel %vm39, %v1017, -1e+30
  %v1020 = vsel %vm40, %v1018, -1e+30
  %v1021 = vld [vmem:[#allocation2] sm:$0xff]
  %v1022 = vld [vmem:[#allocation2 + $0x8] sm:$0xff]
  %v1023 = vsel %vm470, %v1019, -inf
  %1024 = vmax.xlane.f32.xlu0 %v1023
  %v1025 = vpop.xlane.xlu0 %1024
  %v1026 = vsel %vm470, %v1020, -inf
  %1027 = vmax.xlane.f32.xlu0 %v1026
  %v1028 = vpop.xlane.xlu0 %1027
  %v1029 = vmax.f32 %v1021, %v1025
  %v1030 = vmax.f32 %v1022, %v1028
  %v1031 = vsub.f32 %v1021, %v1029
  %v1032 = vsub.f32 %v1022, %v1030
  %v1033 = vmul.f32 %v1031, 1.442695
  %v1034 = vpow.pop %v1033
  %v1035 = vmul.f32 %v1032, 1.442695
  %v1036 = vpow.pop %v1035
  %1038 = vset.pattern.permute.xlu0 1
  %1039 = vperm.xlu0 %1038, %v1029
  %v1040 = vpop.permute.xlu0 %1039
  %1043 = vset.pattern.permute.xlu0 1
  %1044 = vperm.xlu0 %1043, %v1030
  %v1045 = vpop.permute.xlu0 %1044
  %v1047 = vsub.f32 %v1019, %v1040
  %v1048 = vsub.f32 %v1020, %v1045
  %v1049 = vmul.f32 %v1047, 1.442695
  %v1050 = vpow.pop %v1049
  %v1051 = vmul.f32 %v1048, 1.442695
  %v1052 = vpow.pop %v1051
  %v1053 = vsel %vm39, %v1050, 0.0
  %v1054 = vsel %vm40, %v1052, 0.0
  %v1055 = vld [vmem:[#allocation3] sm:$0xff]
  %v1056 = vld [vmem:[#allocation3 + $0x8] sm:$0xff]
  %v1057 = vmul.f32 %v1034, %v1055
  %v1058 = vmul.f32 %v1036, %v1056
  %v1059 = vsel %vm470, %v1053, 0.0
  %1060 = vadd.xlane.f32.xlu0 %v1059
  %v1061 = vpop.xlane.xlu0 %1060
  %v1062 = vsel %vm470, %v1054, 0.0
  %1063 = vadd.xlane.f32.xlu0 %v1062
  %v1064 = vpop.xlane.xlu0 %1063
  %v1065 = vadd.f32 %v1057, %v1061
  %v1066 = vadd.f32 %v1058, %v1064
  %vm1067 = vcmask 15368
  %1068 = vst.msk [vmem:[#allocation3] sm:$0xff] %vm1067, %v1065
  %1069 = vst.msk [vmem:[#allocation3 + $0x8] sm:$0xff] %vm1067, %v1066
  %1070 = vst.msk [vmem:[#allocation2] sm:$0xff] %vm1067, %v1029
  %1071 = vst.msk [vmem:[#allocation2 + $0x8] sm:$0xff] %vm1067, %v1030
  %v1072 = vpack.c.bf16 %v1054, %v1053
  %v1074 = vrot.slane %v521, 2
  %v1076 = vsel %vm470, %v1072, 0
  %v1079 = vsel %vm470, %v1074, 0
  %1081 = vmatprep.subr.bf16.mxu0 0
  %1082 = vmatpush1.bf16.xpose.msra.mxu0 0
  %1083 = vmatprep.subr.bf16.mxu0 0
  %1084 = vmatpush1.bf16.xpose.msra.mxu0 0
  %1085 = vmatprep.subr.bf16.mxu0 0
  %1086 = vmatpush1.bf16.xpose.msra.mxu0 0
  %1087 = vmatprep.subr.bf16.mxu0 0
  %1088 = vmatpush1.bf16.xpose.msra.mxu0 0
  %1089 = vmatprep.subr.bf16.mxu0 0
  %1090 = vmatpush1.bf16.xpose.msra.mxu0 0
  %1091 = vmatprep.subr.bf16.mxu0 0
  %1092 = vmatpush1.bf16.xpose.msra.mxu0 0
  %1093 = vmatprep.subr.bf16.mxu0 0
  %1094 = vmatpush1.bf16.xpose.msra.mxu0 0
  %1095 = vmatprep.subr.bf16.mxu0 0
  %1096 = vmatpush1.bf16.xpose.msra.mxu0 %v1079
  %1097 = vmatprep.subr.bf16.mxu0 0
  %1098 = vmatpush2.bf16.xpose.msra.mxu0 0
  %1099 = vmatprep.subr.bf16.mxu0 0
  %1100 = vmatpush2.bf16.xpose.msra.mxu0 0
  %1101 = vmatprep.subr.bf16.mxu0 0
  %1102 = vmatpush2.bf16.xpose.msra.mxu0 0
  %1103 = vmatprep.subr.bf16.mxu0 0
  %1104 = vmatpush2.bf16.xpose.msra.mxu0 0
  %1105 = vmatprep.subr.bf16.mxu0 0
  %1106 = vmatpush2.bf16.xpose.msra.mxu0 0
  %1107 = vmatprep.subr.bf16.mxu0 0
  %1108 = vmatpush2.bf16.xpose.msra.mxu0 0
  %1109 = vmatprep.subr.bf16.mxu0 0
  %1110 = vmatpush2.bf16.xpose.msra.mxu0 0
  %1111 = vmatprep.subr.bf16.mxu0 0
  %1112 = vmatpush2.bf16.xpose.msra.mxu0 0
  %1113 = vmatprep.mubr.bf16.mxu0 0
  %1114 = vmatmul.mubr.bf16.gmra.mxu0 %v1076
  %v1115 = vpop.f32.mrf.mxu0
  %v1116 = vadd.f32 0.0, %v1115
  %v1117 = vpop.f32.mrf.mxu0
  %v1118 = vpop.f32.mrf.mxu0
  %v1119 = vadd.f32 0.0, %v1118
  %v1120 = vpop.f32.mrf.mxu0
  %1121 = vdwg.mxu0
  %v1122 = vld [vmem:[%s5] sm:$0xff]
  %v1123 = vld [vmem:[%s5 + $0x8] sm:$0xff]
  %1125 = vset.pattern.permute.xlu0 1
  %1126 = vperm.xlu0 %1125, %v1034
  %v1127 = vpop.permute.xlu0 %1126
  %1130 = vset.pattern.permute.xlu0 1
  %1131 = vperm.xlu0 %1130, %v1036
  %v1132 = vpop.permute.xlu0 %1131
  %v1134 = vmul.f32 %v1127, %v1122
  %v1135 = vmul.f32 %v1132, %v1123
  %1138 = vrot.lane.b32.xlu0 %v1116, 4
  %v1139 = vpop.permute.xlu0 %1138
  %1140 = vrot.lane.b32.xlu0 %v1119, 4
  %v1141 = vpop.permute.xlu0 %1140
  %v1144 = vadd.f32 %v1134, %v1139
  %v1145 = vadd.f32 %v1135, %v1141
  %vm1146 = vcmask 64544
  %1147 = vst.msk [vmem:[%s5] sm:$0xff] %vm1146, %v1144
  %1148 = vst.msk [vmem:[%s5 + $0x8] sm:$0xff] %vm1146, %v1145
  // Predicated region
  $region26: #{tpu_custom_call.1} parent=0 // pred_check
    %p1149 = pneg %p21
  $region27: #{tpu_custom_call.1} parent=0 // pred_check_branch
    %1151 = sbr.rel (%p1149) target = $region29
  $region28: #{tpu_custom_call.1} parent=0 // pred_region
    %v1152 = vld [vmem:[#allocation3] sm:$0xff]
    %v1153 = vld [vmem:[#allocation3 + $0x8] sm:$0xff]
    %v1154 = vadd.f32 %v1152, 1e-16
    %v1155 = vadd.f32 %v1153, 1e-16
    %v1156 = vrcp.pop %v1154
    %v1157 = vrcp.pop %v1155
    %v1158 = vld [vmem:[%s5] sm:$0xff]
    %v1159 = vld [vmem:[%s5 + $0x8] sm:$0xff]
    %1161 = vset.pattern.permute.xlu0 0
    %1162 = vperm.xlu0 %1161, %v1156
    %v1163 = vpop.permute.xlu0 %1162
    %1166 = vset.pattern.permute.xlu0 0
    %1167 = vperm.xlu0 %1166, %v1157
    %v1168 = vpop.permute.xlu0 %1167
    %v1170 = vmul.f32 %v1158, %v1163
    %v1171 = vmul.f32 %v1159, %v1168
    %1172 = vst.msk [vmem:[%s5] sm:$0xff] %vm45, %v1170
    %1173 = vst.msk [vmem:[%s5 + $0x8] sm:$0xff] %vm45, %v1171
    %v1174 = vld [vmem:[%s5] sm:$0xff]
    %v1175 = vld [vmem:[%s5 + $0x8] sm:$0xff]
    %1176 = vset.pattern.permute.xlu0 1
    %1177 = vperm.xlu0 %1176, %v1156
    %v1178 = vpop.permute.xlu0 %1177
    %1180 = vset.pattern.permute.xlu0 1
    %1181 = vperm.xlu0 %1180, %v1157
    %v1182 = vpop.permute.xlu0 %1181
    %v1184 = vmul.f32 %v1174, %v1178
    %v1185 = vmul.f32 %v1175, %v1182
    %1186 = vst.msk [vmem:[%s5] sm:$0xff] %vm1146, %v1184
    %1187 = vst.msk [vmem:[%s5 + $0x8] sm:$0xff] %vm1146, %v1185
  $region29: #{tpu_custom_call.1} parent=0 // pred_fallthru
    _
  // Predicated region
  $region30: #{tpu_custom_call.1} parent=0 // pred_check
    _
  $region31: #{tpu_custom_call.1} parent=0 // pred_check_branch
    %1189 = sbr.rel (0) target = $region33
  $region32: #{tpu_custom_call.1} parent=0 // pred_region
    _
  $region33: #{tpu_custom_call.1} parent=0 // pred_fallthru
    _
  // Predicated region
  $region34: #{tpu_custom_call.1} parent=0 // pred_check
    _
  $region35: #{tpu_custom_call.1} parent=0 // pred_check_branch
    %1191 = sbr.rel (0) target = $region37
  $region36: #{tpu_custom_call.1} parent=0 // pred_region
    _
  $region37: #{tpu_custom_call.1} parent=0 // pred_fallthru
    _

</llo_original>
